<compile_context>
chip_gen: v6e
topology: v6e:2x2x1
jax: 0.10.0
libtpu: 0.0.40
codegen_flags: <defaults>
</compile_context>

<pallas_src>
import functools
import math

import jax
import jax.numpy as jnp
from jax.experimental import pallas as pl
from jax.experimental.pallas import tpu as pltpu


# --------------------------------- kernel ------------------------------------

def _fused_block_kernel(x_ref, mask_ref, w1_ref, b1_ref, w2_ref, wd_ref,
                        bsum_ref, o_ref, p1_ref, h1p_ref, p2_ref,
                        *, H, W, cin, cmid, cout):
    # Per grid step (one batch element), with P = W+2, HP = H*P, NPE = (H+2)*P+2:
    #   x_ref   : (1, cin, NPE)  bf16  zero-padded input, spatial flattened over P
    #   mask_ref: (1, HP)        f32   1.0 on valid cols, 0.0 on the 2 wrap cols
    #   w1_ref  : (cmid, 9*cin)  bf16  conv1 weights (BN folded), (Cout, K) layout
    #   b1_ref  : (cmid, 1)      f32
    #   w2_ref  : (cout, 9*cmid) bf16  conv2 weights (BN folded)
    #   wd_ref  : (cout, cin)    bf16  downsample 1x1 weights (BN folded)
    #   bsum_ref: (cout, 1)      f32   b2 + bd (pre-summed)
    #   o_ref   : (1, cout, HP)  f32   output in the padded-width domain
    #   p1_ref  : (9*cin, HP)    bf16  conv1 im2col patch matrix (VMEM scratch)
    #   h1p_ref : (cmid, NPE)    bf16  zero-padded conv1 activation (scratch)
    #   p2_ref  : (9*cmid, HP)   bf16  conv2 im2col patch matrix (scratch)
    P = W + 2
    HP = H * P

    # ---- conv1 im2col: every 3x3 tap is a constant lane offset of the flat x
    x = x_ref[0]                                         # (cin, NPE) bf16
    for ky in range(3):
        for kx in range(3):
            t = ky * 3 + kx
            off = ky * P + kx
            p1_ref[t * cin:(t + 1) * cin, :] = x[:, off:off + HP]

    # ---- conv1: single K=9*cin MXU dot + folded BN + ReLU (lane-dense)
    acc1 = jnp.dot(w1_ref[...], p1_ref[...],
                   preferred_element_type=jnp.float32)   # (cmid, HP) f32
    h1 = jnp.maximum(acc1 + b1_ref[...], 0.0)
    # Zero the two wrap-around columns per row: after the shifted copy below
    # they land exactly on conv2's zero-padding positions.
    h1 = (h1 * mask_ref[...]).astype(jnp.bfloat16)       # (cmid, HP) bf16

    # ---- zero-pad h1 for conv2: border-only zeroing + ONE shifted copy
    h1p_ref[:, 0:P + 1] = jnp.zeros((cmid, P + 1), jnp.bfloat16)
    h1p_ref[:, P + 1:P + 1 + HP] = h1
    h1p_ref[:, P + 1 + HP:] = jnp.zeros((cmid, P + 1), jnp.bfloat16)

    # ---- conv2 im2col from the padded h1
    h1p = h1p_ref[...]                                   # (cmid, NPE) bf16
    for ky in range(3):
        for kx in range(3):
            t = ky * 3 + kx
            off = ky * P + kx
            p2_ref[t * cmid:(t + 1) * cmid, :] = h1p[:, off:off + HP]

    # ---- conv2: single K=9*cmid MXU dot + folded BN
    acc2 = jnp.dot(w2_ref[...], p2_ref[...],
                   preferred_element_type=jnp.float32)   # (cout, HP) f32

    # ---- downsample branch: 1x1 conv (zero-offset deformable) + folded BN.
    # The centre tap (ky=kx=1) slab of the conv1 patch matrix IS the original
    # unpadded input, so reuse it -- no extra slice/relayout.
    ds = jnp.dot(wd_ref[...], p1_ref[4 * cin:5 * cin, :],
                 preferred_element_type=jnp.float32)     # (cout, HP) f32

    # ---- residual add + (b2+bd) + ReLU, stored lane-dense as (cout, HP)
    o_ref[0] = jnp.maximum(acc2 + ds + bsum_ref[...], 0.0)


# --------------------------------- wrapper -----------------------------------

def deformable_iam_double_forward(params, x_nchw, residual=None):
    # NOTE: the reference forward ignores `residual` (it is overwritten with x).
    del residual
    B, C, H, W = x_nchw.shape
    cmid = params['b1'].shape[0]
    cout = params['bsum'].shape[0]
    assert C % 8 == 0 and cmid % 8 == 0 and cout % 8 == 0

    P = W + 2
    HP = H * P
    NPE = (H + 2) * P + 2   # +2 so the largest tap offset (2P+2) stays in bounds

    # bf16 input, padded once.  NCHW already matches the kernel's (C, spatial)
    # layout, so there is no transpose at all; spatial is flattened over the
    # padded width so every conv tap becomes a constant lane offset.
    xp = jnp.pad(x_nchw.astype(jnp.bfloat16), ((0, 0), (0, 0), (1, 1), (1, 1)))
    xflat = jnp.pad(xp.reshape(B, C, (H + 2) * P), ((0, 0), (0, 0), (0, 2)))

    # lane mask for the two wrap-around columns of the padded-width domain
    cols = jnp.arange(HP, dtype=jnp.int32) % P
    mask = (cols < W).astype(jnp.float32).reshape(1, HP)

    out_flat = pl.pallas_call(
        functools.partial(_fused_block_kernel,
                          H=H, W=W, cin=C, cmid=cmid, cout=cout),
        out_shape=jax.ShapeDtypeStruct((B, cout, HP), jnp.float32),
        grid=(B,),
        in_specs=[
            pl.BlockSpec((1, C, NPE), lambda i: (i, 0, 0)),
            pl.BlockSpec((1, HP), lambda i: (0, 0)),
            pl.BlockSpec((cmid, 9 * C), lambda i: (0, 0)),
            pl.BlockSpec((cmid, 1), lambda i: (0, 0)),
            pl.BlockSpec((cout, 9 * cmid), lambda i: (0, 0)),
            pl.BlockSpec((cout, C), lambda i: (0, 0)),
            pl.BlockSpec((cout, 1), lambda i: (0, 0)),
        ],
        out_specs=pl.BlockSpec((1, cout, HP), lambda i: (i, 0, 0)),
        scratch_shapes=[
            pltpu.VMEM((9 * C, HP), jnp.bfloat16),     # conv1 patch matrix
            pltpu.VMEM((cmid, NPE), jnp.bfloat16),     # zero-padded h1
            pltpu.VMEM((9 * cmid, HP), jnp.bfloat16),  # conv2 patch matrix
        ],
        compiler_params=pltpu.CompilerParams(
            dimension_semantics=("parallel",)),
    )(xflat, mask, params['w1'], params['b1'], params['w2'],
      params['wd'], params['bsum'])

    # drop the two wrap-around columns of each row -> NCHW output
    return out_flat.reshape(B, cout, H, P)[:, :, :, :W]


# --------------------------- parameter construction --------------------------

def _fold_bn(w, b, gamma, beta, mean, var, eps=1e-5):
    # Eval-mode BatchNorm folded into the preceding conv (Cout is last axis).
    scale = gamma / jnp.sqrt(var + eps)
    return w * scale, (b - mean) * scale + beta


def init_params(key, in_channels, out_channels, *, init_bias_value=0.0):
    ks = iter(jax.random.split(key, 16))

    def normal(shape, std=0.01):
        return std * jax.random.normal(next(ks), shape, jnp.float32)

    def bn_stats(c):
        gamma = jax.random.uniform(next(ks), (c,), jnp.float32, 0.5, 1.5)
        beta = jax.random.uniform(next(ks), (c,), jnp.float32, -0.1, 0.1)
        mean = jax.random.uniform(next(ks), (c,), jnp.float32, -0.1, 0.1)
        var = jax.random.uniform(next(ks), (c,), jnp.float32, 0.5, 1.5)
        return gamma, beta, mean, var

    # conv: Conv3x3 + BN + ReLU  (init_weights: normal(std=0.01), constant bias)
    w1 = normal((3, 3, in_channels, out_channels))          # HWIO
    b1 = jnp.full((out_channels,), init_bias_value, jnp.float32)
    w1, b1 = _fold_bn(w1, b1, *bn_stats(out_channels))

    # conv2: Conv3x3 + BN
    w2 = normal((3, 3, out_channels, out_channels))
    b2 = jnp.full((out_channels,), init_bias_value, jnp.float32)
    w2, b2 = _fold_bn(w2, b2, *bn_stats(out_channels))

    # downsample: DeformableConv2d(1x1) + BN  (zero offsets -> plain 1x1 conv)
    lim = 1.0 / math.sqrt(in_channels)
    wd = jax.random.uniform(next(ks), (in_channels, out_channels),
                            jnp.float32, -lim, lim)
    bd = jax.random.uniform(next(ks), (out_channels,), jnp.float32, -lim, lim)
    wd, bd = _fold_bn(wd, bd, *bn_stats(out_channels))

    # Kernel-ready layouts: weights pre-transposed to (Cout, K) so the MXU dots
    # produce (Cout, HW) directly; bf16 MXU operands; (C,1) biases; b2+bd summed.
    w1_k = jnp.transpose(w1, (3, 0, 1, 2)).reshape(out_channels, 9 * in_channels)
    w2_k = jnp.transpose(w2, (3, 0, 1, 2)).reshape(out_channels, 9 * out_channels)
    return {
        'w1': w1_k.astype(jnp.bfloat16), 'b1': b1.reshape(-1, 1),
        'w2': w2_k.astype(jnp.bfloat16),
        'wd': wd.T.astype(jnp.bfloat16),
        'bsum': (b2 + bd).reshape(-1, 1),
    }


# ------------------------------ pure-JAX reference ----------------------------

def reference_forward(params, x_nchw):
    # f32-accumulated reference with the same bf16 quantisation points as the
    # kernel (x, weights, h1), so the comparison tolerance can be tight.
    B, C, H, W = x_nchw.shape
    cmid = params['b1'].shape[0]
    cout = params['bsum'].shape[0]

    w1 = params['w1'].astype(jnp.float32).reshape(cmid, 3, 3, C).transpose(1, 2, 3, 0)
    w2 = params['w2'].astype(jnp.float32).reshape(cout, 3, 3, cmid).transpose(1, 2, 3, 0)
    wd = params['wd'].astype(jnp.float32).T                  # (Cin, Cout)
    b1 = params['b1'][:, 0]
    bsum = params['bsum'][:, 0]

    x = jnp.transpose(x_nchw, (0, 2, 3, 1))                  # NHWC
    xq = x.astype(jnp.bfloat16).astype(jnp.float32)

    def conv3x3(inp, w):
        xp = jnp.pad(inp, ((0, 0), (1, 1), (1, 1), (0, 0)))
        acc = jnp.zeros(inp.shape[:3] + (w.shape[-1],), jnp.float32)
        for ky in range(3):
            for kx in range(3):
                acc = acc + jnp.einsum('bhwc,cd->bhwd',
                                       xp[:, ky:ky + H, kx:kx + W, :], w[ky, kx])
        return acc

    h1 = jax.nn.relu(conv3x3(xq, w1) + b1)
    h1q = h1.astype(jnp.bfloat16).astype(jnp.float32)
    h2 = conv3x3(h1q, w2)
    ds = jnp.einsum('bhwc,cd->bhwd', xq, wd)
    out = jax.nn.relu(h2 + ds + bsum)
    return jnp.transpose(out, (0, 3, 1, 2))


# ----------------------------------- main -------------------------------------

if __name__ == "__main__":
    key = jax.random.PRNGKey(0)
    k_param, k_x = jax.random.split(key)

    B, IN_CHANNELS, OUT_CHANNELS, H, W = 2, 32, 32, 16, 16

    params = init_params(k_param, IN_CHANNELS, OUT_CHANNELS,
                         init_bias_value=0.0)
    x = jax.random.normal(k_x, (B, IN_CHANNELS, H, W), jnp.float32)

    out = deformable_iam_double_forward(params, x, residual=x)
    out = jax.block_until_ready(out)

    assert out.shape == (B, OUT_CHANNELS, H, W)
    assert bool(jnp.all(jnp.isfinite(out)))
    assert bool(jnp.all(out >= 0.0))                          # final ReLU

    ref = reference_forward(params, x)
    max_abs = float(jnp.max(jnp.abs(out - ref)))
    max_rel = max_abs / (float(jnp.max(jnp.abs(ref))) + 1e-6)
    assert max_abs < 2e-3 and max_rel < 1e-2, (
        f"max abs err {max_abs}, max rel err {max_rel}")

    print("KERNEL_OK")
</pallas_src>

<mosaic_0001>
module attributes {stable_mosaic.version = 11 : i64} {
  func.func @_fused_block_kernel(%arg0: i32, %arg1: memref<1x32x326xbf16, #tpu.memory_space<vmem>>, %arg2: memref<1x288xf32, #tpu.memory_space<vmem>>, %arg3: memref<32x288xbf16, #tpu.memory_space<vmem>>, %arg4: memref<32x1xf32, #tpu.memory_space<vmem>>, %arg5: memref<32x288xbf16, #tpu.memory_space<vmem>>, %arg6: memref<32x32xbf16, #tpu.memory_space<vmem>>, %arg7: memref<32x1xf32, #tpu.memory_space<vmem>>, %arg8: memref<1x32x288xf32, #tpu.memory_space<vmem>>, %arg9: memref<288x288xbf16, #tpu.memory_space<vmem>>, %arg10: memref<32x326xbf16, #tpu.memory_space<vmem>>, %arg11: memref<288x288xbf16, #tpu.memory_space<vmem>>) attributes {dimension_semantics = [#tpu.dimension_semantics<parallel>], iteration_bounds = array<i64: 2>, scalar_prefetch = 0 : i64, scratch_operands = 3 : i64, tpu.core_type = #tpu.core_type<tc>, window_params = [{transform_indices = @transform_0, window_bounds = array<i64: 1, 32, 326>}, {pipeline_mode = #tpu.pipeline_mode<synchronous>, transform_indices = @transform_1, window_bounds = array<i64: 1, 288>}, {pipeline_mode = #tpu.pipeline_mode<synchronous>, transform_indices = @transform_2, window_bounds = array<i64: 32, 288>}, {pipeline_mode = #tpu.pipeline_mode<synchronous>, transform_indices = @transform_3, window_bounds = array<i64: 32, 1>}, {pipeline_mode = #tpu.pipeline_mode<synchronous>, transform_indices = @transform_4, window_bounds = array<i64: 32, 288>}, {pipeline_mode = #tpu.pipeline_mode<synchronous>, transform_indices = @transform_5, window_bounds = array<i64: 32, 32>}, {pipeline_mode = #tpu.pipeline_mode<synchronous>, transform_indices = @transform_6, window_bounds = array<i64: 32, 1>}, {transform_indices = @transform_7, window_bounds = array<i64: 1, 32, 288>}]} {
    %c0 = arith.constant 0 : index
    %c0_0 = arith.constant 0 : index
    %c0_1 = arith.constant 0 : index
    %0 = vector.load %arg1[%c0, %c0_0, %c0_1] : memref<1x32x326xbf16, #tpu.memory_space<vmem>>, vector<1x32x326xbf16>
    %1 = vector.shape_cast %0 : vector<1x32x326xbf16> to vector<32x326xbf16>
    %2 = vector.extract_strided_slice %1 {offsets = [0, 0], sizes = [32, 288], strides = [1, 1]} : vector<32x326xbf16> to vector<32x288xbf16>
    %c0_2 = arith.constant 0 : index
    %c0_3 = arith.constant 0 : index
    %3 = vector.load %arg9[%c0_2, %c0_3] : memref<288x288xbf16, #tpu.memory_space<vmem>>, vector<32x288xbf16>
    tpu.vector_store %arg9[%c0_2, %c0_3], %2 {strides = array<i32>} : memref<288x288xbf16, #tpu.memory_space<vmem>>, vector<32x288xbf16>,
    %4 = vector.extract_strided_slice %1 {offsets = [0, 1], sizes = [32, 288], strides = [1, 1]} : vector<32x326xbf16> to vector<32x288xbf16>
    %c32 = arith.constant 32 : index
    %c0_4 = arith.constant 0 : index
    %5 = vector.load %arg9[%c32, %c0_4] : memref<288x288xbf16, #tpu.memory_space<vmem>>, vector<32x288xbf16>
    tpu.vector_store %arg9[%c32, %c0_4], %4 {strides = array<i32>} : memref<288x288xbf16, #tpu.memory_space<vmem>>, vector<32x288xbf16>,
    %6 = vector.extract_strided_slice %1 {offsets = [0, 2], sizes = [32, 288], strides = [1, 1]} : vector<32x326xbf16> to vector<32x288xbf16>
    %c64 = arith.constant 64 : index
    %c0_5 = arith.constant 0 : index
    %7 = vector.load %arg9[%c64, %c0_5] : memref<288x288xbf16, #tpu.memory_space<vmem>>, vector<32x288xbf16>
    tpu.vector_store %arg9[%c64, %c0_5], %6 {strides = array<i32>} : memref<288x288xbf16, #tpu.memory_space<vmem>>, vector<32x288xbf16>,
    %8 = vector.extract_strided_slice %1 {offsets = [0, 18], sizes = [32, 288], strides = [1, 1]} : vector<32x326xbf16> to vector<32x288xbf16>
    %c96 = arith.constant 96 : index
    %c0_6 = arith.constant 0 : index
    %9 = vector.load %arg9[%c96, %c0_6] : memref<288x288xbf16, #tpu.memory_space<vmem>>, vector<32x288xbf16>
    tpu.vector_store %arg9[%c96, %c0_6], %8 {strides = array<i32>} : memref<288x288xbf16, #tpu.memory_space<vmem>>, vector<32x288xbf16>,
    %10 = vector.extract_strided_slice %1 {offsets = [0, 19], sizes = [32, 288], strides = [1, 1]} : vector<32x326xbf16> to vector<32x288xbf16>
    %c128 = arith.constant 128 : index
    %c0_7 = arith.constant 0 : index
    %11 = vector.load %arg9[%c128, %c0_7] : memref<288x288xbf16, #tpu.memory_space<vmem>>, vector<32x288xbf16>
    tpu.vector_store %arg9[%c128, %c0_7], %10 {strides = array<i32>} : memref<288x288xbf16, #tpu.memory_space<vmem>>, vector<32x288xbf16>,
    %12 = vector.extract_strided_slice %1 {offsets = [0, 20], sizes = [32, 288], strides = [1, 1]} : vector<32x326xbf16> to vector<32x288xbf16>
    %c160 = arith.constant 160 : index
    %c0_8 = arith.constant 0 : index
    %13 = vector.load %arg9[%c160, %c0_8] : memref<288x288xbf16, #tpu.memory_space<vmem>>, vector<32x288xbf16>
    tpu.vector_store %arg9[%c160, %c0_8], %12 {strides = array<i32>} : memref<288x288xbf16, #tpu.memory_space<vmem>>, vector<32x288xbf16>,
    %14 = vector.extract_strided_slice %1 {offsets = [0, 36], sizes = [32, 288], strides = [1, 1]} : vector<32x326xbf16> to vector<32x288xbf16>
    %c192 = arith.constant 192 : index
    %c0_9 = arith.constant 0 : index
    %15 = vector.load %arg9[%c192, %c0_9] : memref<288x288xbf16, #tpu.memory_space<vmem>>, vector<32x288xbf16>
    tpu.vector_store %arg9[%c192, %c0_9], %14 {strides = array<i32>} : memref<288x288xbf16, #tpu.memory_space<vmem>>, vector<32x288xbf16>,
    %16 = vector.extract_strided_slice %1 {offsets = [0, 37], sizes = [32, 288], strides = [1, 1]} : vector<32x326xbf16> to vector<32x288xbf16>
    %c224 = arith.constant 224 : index
    %c0_10 = arith.constant 0 : index
    %17 = vector.load %arg9[%c224, %c0_10] : memref<288x288xbf16, #tpu.memory_space<vmem>>, vector<32x288xbf16>
    tpu.vector_store %arg9[%c224, %c0_10], %16 {strides = array<i32>} : memref<288x288xbf16, #tpu.memory_space<vmem>>, vector<32x288xbf16>,
    %18 = vector.extract_strided_slice %1 {offsets = [0, 38], sizes = [32, 288], strides = [1, 1]} : vector<32x326xbf16> to vector<32x288xbf16>
    %c256 = arith.constant 256 : index
    %c0_11 = arith.constant 0 : index
    %19 = vector.load %arg9[%c256, %c0_11] : memref<288x288xbf16, #tpu.memory_space<vmem>>, vector<32x288xbf16>
    tpu.vector_store %arg9[%c256, %c0_11], %18 {strides = array<i32>} : memref<288x288xbf16, #tpu.memory_space<vmem>>, vector<32x288xbf16>,
    %c0_12 = arith.constant 0 : index
    %c0_13 = arith.constant 0 : index
    %20 = vector.load %arg3[%c0_12, %c0_13] : memref<32x288xbf16, #tpu.memory_space<vmem>>, vector<32x288xbf16>
    %c0_14 = arith.constant 0 : index
    %c0_15 = arith.constant 0 : index
    %21 = vector.load %arg9[%c0_14, %c0_15] : memref<288x288xbf16, #tpu.memory_space<vmem>>, vector<288x288xbf16>
    %cst = arith.constant dense<0.000000e+00> : vector<32x288xf32>
    %22 = tpu.matmul %20, %21, %cst {dimension_numbers = #tpu.dot_dimension_numbers<[1], [0], [0], [1], [0, 0, 1, 1], [], []>} : vector<32x288xbf16>, vector<288x288xbf16>, vector<32x288xf32> -> vector<32x288xf32>
    %c0_16 = arith.constant 0 : index
    %c0_17 = arith.constant 0 : index
    %23 = vector.load %arg4[%c0_16, %c0_17] : memref<32x1xf32, #tpu.memory_space<vmem>>, vector<32x1xf32>
    %24 = vector.broadcast %23 : vector<32x1xf32> to vector<32x288xf32>
    %25 = arith.addf %22, %24 : vector<32x288xf32>
    %cst_18 = arith.constant 0.000000e+00 : f32
    %26 = vector.broadcast %cst_18 : f32 to vector<32x288xf32>
    %27 = arith.maximumf %25, %26 : vector<32x288xf32>
    %c0_19 = arith.constant 0 : index
    %c0_20 = arith.constant 0 : index
    %28 = vector.load %arg2[%c0_19, %c0_20] : memref<1x288xf32, #tpu.memory_space<vmem>>, vector<1x288xf32>
    %29 = vector.broadcast %28 : vector<1x288xf32> to vector<32x288xf32>
    %30 = arith.mulf %27, %29 : vector<32x288xf32>
    %31 = arith.truncf %30 : vector<32x288xf32> to vector<32x288xbf16>
    %cst_21 = arith.constant 0.000000e+00 : bf16
    %32 = vector.broadcast %cst_21 : bf16 to vector<32x19xbf16>
    %c0_22 = arith.constant 0 : index
    %c0_23 = arith.constant 0 : index
    %33 = vector.load %arg10[%c0_22, %c0_23] : memref<32x326xbf16, #tpu.memory_space<vmem>>, vector<32x19xbf16>
    tpu.vector_store %arg10[%c0_22, %c0_23], %32 {strides = array<i32>} : memref<32x326xbf16, #tpu.memory_space<vmem>>, vector<32x19xbf16>,
    %c0_24 = arith.constant 0 : index
    %c19 = arith.constant 19 : index
    %34 = vector.load %arg10[%c0_24, %c19] : memref<32x326xbf16, #tpu.memory_space<vmem>>, vector<32x288xbf16>
    tpu.vector_store %arg10[%c0_24, %c19], %31 {strides = array<i32>} : memref<32x326xbf16, #tpu.memory_space<vmem>>, vector<32x288xbf16>,
    %cst_25 = arith.constant 0.000000e+00 : bf16
    %35 = vector.broadcast %cst_25 : bf16 to vector<32x19xbf16>
    %c0_26 = arith.constant 0 : index
    %c307 = arith.constant 307 : index
    %36 = vector.load %arg10[%c0_26, %c307] : memref<32x326xbf16, #tpu.memory_space<vmem>>, vector<32x19xbf16>
    tpu.vector_store %arg10[%c0_26, %c307], %35 {strides = array<i32>} : memref<32x326xbf16, #tpu.memory_space<vmem>>, vector<32x19xbf16>,
    %c0_27 = arith.constant 0 : index
    %c0_28 = arith.constant 0 : index
    %37 = vector.load %arg10[%c0_27, %c0_28] : memref<32x326xbf16, #tpu.memory_space<vmem>>, vector<32x326xbf16>
    %38 = vector.extract_strided_slice %37 {offsets = [0, 0], sizes = [32, 288], strides = [1, 1]} : vector<32x326xbf16> to vector<32x288xbf16>
    %c0_29 = arith.constant 0 : index
    %c0_30 = arith.constant 0 : index
    %39 = vector.load %arg11[%c0_29, %c0_30] : memref<288x288xbf16, #tpu.memory_space<vmem>>, vector<32x288xbf16>
    tpu.vector_store %arg11[%c0_29, %c0_30], %38 {strides = array<i32>} : memref<288x288xbf16, #tpu.memory_space<vmem>>, vector<32x288xbf16>,
    %40 = vector.extract_strided_slice %37 {offsets = [0, 1], sizes = [32, 288], strides = [1, 1]} : vector<32x326xbf16> to vector<32x288xbf16>
    %c32_31 = arith.constant 32 : index
    %c0_32 = arith.constant 0 : index
    %41 = vector.load %arg11[%c32_31, %c0_32] : memref<288x288xbf16, #tpu.memory_space<vmem>>, vector<32x288xbf16>
    tpu.vector_store %arg11[%c32_31, %c0_32], %40 {strides = array<i32>} : memref<288x288xbf16, #tpu.memory_space<vmem>>, vector<32x288xbf16>,
    %42 = vector.extract_strided_slice %37 {offsets = [0, 2], sizes = [32, 288], strides = [1, 1]} : vector<32x326xbf16> to vector<32x288xbf16>
    %c64_33 = arith.constant 64 : index
    %c0_34 = arith.constant 0 : index
    %43 = vector.load %arg11[%c64_33, %c0_34] : memref<288x288xbf16, #tpu.memory_space<vmem>>, vector<32x288xbf16>
    tpu.vector_store %arg11[%c64_33, %c0_34], %42 {strides = array<i32>} : memref<288x288xbf16, #tpu.memory_space<vmem>>, vector<32x288xbf16>,
    %44 = vector.extract_strided_slice %37 {offsets = [0, 18], sizes = [32, 288], strides = [1, 1]} : vector<32x326xbf16> to vector<32x288xbf16>
    %c96_35 = arith.constant 96 : index
    %c0_36 = arith.constant 0 : index
    %45 = vector.load %arg11[%c96_35, %c0_36] : memref<288x288xbf16, #tpu.memory_space<vmem>>, vector<32x288xbf16>
    tpu.vector_store %arg11[%c96_35, %c0_36], %44 {strides = array<i32>} : memref<288x288xbf16, #tpu.memory_space<vmem>>, vector<32x288xbf16>,
    %46 = vector.extract_strided_slice %37 {offsets = [0, 19], sizes = [32, 288], strides = [1, 1]} : vector<32x326xbf16> to vector<32x288xbf16>
    %c128_37 = arith.constant 128 : index
    %c0_38 = arith.constant 0 : index
    %47 = vector.load %arg11[%c128_37, %c0_38] : memref<288x288xbf16, #tpu.memory_space<vmem>>, vector<32x288xbf16>
    tpu.vector_store %arg11[%c128_37, %c0_38], %46 {strides = array<i32>} : memref<288x288xbf16, #tpu.memory_space<vmem>>, vector<32x288xbf16>,
    %48 = vector.extract_strided_slice %37 {offsets = [0, 20], sizes = [32, 288], strides = [1, 1]} : vector<32x326xbf16> to vector<32x288xbf16>
    %c160_39 = arith.constant 160 : index
    %c0_40 = arith.constant 0 : index
    %49 = vector.load %arg11[%c160_39, %c0_40] : memref<288x288xbf16, #tpu.memory_space<vmem>>, vector<32x288xbf16>
    tpu.vector_store %arg11[%c160_39, %c0_40], %48 {strides = array<i32>} : memref<288x288xbf16, #tpu.memory_space<vmem>>, vector<32x288xbf16>,
    %50 = vector.extract_strided_slice %37 {offsets = [0, 36], sizes = [32, 288], strides = [1, 1]} : vector<32x326xbf16> to vector<32x288xbf16>
    %c192_41 = arith.constant 192 : index
    %c0_42 = arith.constant 0 : index
    %51 = vector.load %arg11[%c192_41, %c0_42] : memref<288x288xbf16, #tpu.memory_space<vmem>>, vector<32x288xbf16>
    tpu.vector_store %arg11[%c192_41, %c0_42], %50 {strides = array<i32>} : memref<288x288xbf16, #tpu.memory_space<vmem>>, vector<32x288xbf16>,
    %52 = vector.extract_strided_slice %37 {offsets = [0, 37], sizes = [32, 288], strides = [1, 1]} : vector<32x326xbf16> to vector<32x288xbf16>
    %c224_43 = arith.constant 224 : index
    %c0_44 = arith.constant 0 : index
    %53 = vector.load %arg11[%c224_43, %c0_44] : memref<288x288xbf16, #tpu.memory_space<vmem>>, vector<32x288xbf16>
    tpu.vector_store %arg11[%c224_43, %c0_44], %52 {strides = array<i32>} : memref<288x288xbf16, #tpu.memory_space<vmem>>, vector<32x288xbf16>,
    %54 = vector.extract_strided_slice %37 {offsets = [0, 38], sizes = [32, 288], strides = [1, 1]} : vector<32x326xbf16> to vector<32x288xbf16>
    %c256_45 = arith.constant 256 : index
    %c0_46 = arith.constant 0 : index
    %55 = vector.load %arg11[%c256_45, %c0_46] : memref<288x288xbf16, #tpu.memory_space<vmem>>, vector<32x288xbf16>
    tpu.vector_store %arg11[%c256_45, %c0_46], %54 {strides = array<i32>} : memref<288x288xbf16, #tpu.memory_space<vmem>>, vector<32x288xbf16>,
    %c0_47 = arith.constant 0 : index
    %c0_48 = arith.constant 0 : index
    %56 = vector.load %arg5[%c0_47, %c0_48] : memref<32x288xbf16, #tpu.memory_space<vmem>>, vector<32x288xbf16>
    %c0_49 = arith.constant 0 : index
    %c0_50 = arith.constant 0 : index
    %57 = vector.load %arg11[%c0_49, %c0_50] : memref<288x288xbf16, #tpu.memory_space<vmem>>, vector<288x288xbf16>
    %cst_51 = arith.constant dense<0.000000e+00> : vector<32x288xf32>
    %58 = tpu.matmul %56, %57, %cst_51 {dimension_numbers = #tpu.dot_dimension_numbers<[1], [0], [0], [1], [0, 0, 1, 1], [], []>} : vector<32x288xbf16>, vector<288x288xbf16>, vector<32x288xf32> -> vector<32x288xf32>
    %c0_52 = arith.constant 0 : index
    %c0_53 = arith.constant 0 : index
    %59 = vector.load %arg6[%c0_52, %c0_53] : memref<32x32xbf16, #tpu.memory_space<vmem>>, vector<32x32xbf16>
    %c128_54 = arith.constant 128 : index
    %c0_55 = arith.constant 0 : index
    %60 = vector.load %arg9[%c128_54, %c0_55] : memref<288x288xbf16, #tpu.memory_space<vmem>>, vector<32x288xbf16>
    %cst_56 = arith.constant dense<0.000000e+00> : vector<32x288xf32>
    %61 = tpu.matmul %59, %60, %cst_56 {dimension_numbers = #tpu.dot_dimension_numbers<[1], [0], [0], [1], [0, 0, 1, 1], [], []>} : vector<32x32xbf16>, vector<32x288xbf16>, vector<32x288xf32> -> vector<32x288xf32>
    %62 = arith.addf %58, %61 : vector<32x288xf32>
    %c0_57 = arith.constant 0 : index
    %c0_58 = arith.constant 0 : index
    %63 = vector.load %arg7[%c0_57, %c0_58] : memref<32x1xf32, #tpu.memory_space<vmem>>, vector<32x1xf32>
    %64 = vector.broadcast %63 : vector<32x1xf32> to vector<32x288xf32>
    %65 = arith.addf %62, %64 : vector<32x288xf32>
    %cst_59 = arith.constant 0.000000e+00 : f32
    %66 = vector.broadcast %cst_59 : f32 to vector<32x288xf32>
    %67 = arith.maximumf %65, %66 : vector<32x288xf32>
    %c0_60 = arith.constant 0 : index
    %c0_61 = arith.constant 0 : index
    %c0_62 = arith.constant 0 : index
    %68 = vector.load %arg8[%c0_60, %c0_61, %c0_62] : memref<1x32x288xf32, #tpu.memory_space<vmem>>, vector<1x32x288xf32>
    %69 = vector.shape_cast %68 : vector<1x32x288xf32> to vector<32x288xf32>
    %70 = vector.shape_cast %67 : vector<32x288xf32> to vector<1x32x288xf32>
    tpu.vector_store %arg8[%c0_60, %c0_61, %c0_62], %70 {strides = array<i32>} : memref<1x32x288xf32, #tpu.memory_space<vmem>>, vector<1x32x288xf32>,
    return
  }
  func.func @transform_0(%arg0: i32) -> (i32, i32, i32) {
    %c0_i32 = arith.constant 0 : i32
    %c0_i32_0 = arith.constant 0 : i32
    %c0_i32_1 = arith.constant 0 : i32
    return %arg0, %c0_i32, %c0_i32_0 : i32, i32, i32
  }
  func.func @transform_1(%arg0: i32) -> (i32, i32) {
    %c0_i32 = arith.constant 0 : i32
    %c0_i32_0 = arith.constant 0 : i32
    %c0_i32_1 = arith.constant 0 : i32
    return %c0_i32, %c0_i32_0 : i32, i32
  }
  func.func @transform_2(%arg0: i32) -> (i32, i32) {
    %c0_i32 = arith.constant 0 : i32
    %c0_i32_0 = arith.constant 0 : i32
    %c0_i32_1 = arith.constant 0 : i32
    return %c0_i32, %c0_i32_0 : i32, i32
  }
  func.func @transform_3(%arg0: i32) -> (i32, i32) {
    %c0_i32 = arith.constant 0 : i32
    %c0_i32_0 = arith.constant 0 : i32
    %c0_i32_1 = arith.constant 0 : i32
    return %c0_i32, %c0_i32_0 : i32, i32
  }
  func.func @transform_4(%arg0: i32) -> (i32, i32) {
    %c0_i32 = arith.constant 0 : i32
    %c0_i32_0 = arith.constant 0 : i32
    %c0_i32_1 = arith.constant 0 : i32
    return %c0_i32, %c0_i32_0 : i32, i32
  }
  func.func @transform_5(%arg0: i32) -> (i32, i32) {
    %c0_i32 = arith.constant 0 : i32
    %c0_i32_0 = arith.constant 0 : i32
    %c0_i32_1 = arith.constant 0 : i32
    return %c0_i32, %c0_i32_0 : i32, i32
  }
  func.func @transform_6(%arg0: i32) -> (i32, i32) {
    %c0_i32 = arith.constant 0 : i32
    %c0_i32_0 = arith.constant 0 : i32
    %c0_i32_1 = arith.constant 0 : i32
    return %c0_i32, %c0_i32_0 : i32, i32
  }
  func.func @transform_7(%arg0: i32) -> (i32, i32, i32) {
    %c0_i32 = arith.constant 0 : i32
    %c0_i32_0 = arith.constant 0 : i32
    %c0_i32_1 = arith.constant 0 : i32
    return %arg0, %c0_i32, %c0_i32_0 : i32, i32, i32
  }
}

</mosaic_0001>

<llo_original>
// kernel: tpu_custom_call.1
$region0: #{tpu_custom_call.1}
  #allocation0 [shape = 'u32[]', space=smem, size = 0x4, offset = 0x4, fixed_abs, tag = 'smem constant byte address 0x4 - core index']
  #allocation1 [shape = 'u32[144,128]{1,0:T(1,128)}', space=vmem, size = 0x12000, scoped, tag = 'internal scratch']
  #allocation2 [shape = 'bf16[288,288]{1,0:T(8,128)(2,1)}', space=vmem, size = 0x36000, scoped, tag = 'scratch operand']
  #allocation3 [shape = 'bf16[32,326]{1,0:T(8,128)(2,1)}', space=vmem, size = 0x6000, scoped, tag = 'scratch operand']
  #allocation4 [shape = 'bf16[288,288]{1,0:T(8,128)(2,1)}', space=vmem, size = 0x36000, scoped, tag = 'scratch operand']
  %s0 = inlined_call_operand.hbm [shape: bf16[2,32,326], index: 0, kind: input, shape index: {}]
  %s1 = inlined_call_operand.vmem [shape: f32[1,288], index: 1, kind: input, shape index: {}]
  %s2 = inlined_call_operand.vmem [shape: bf16[32,288], index: 2, kind: input, shape index: {}]
  %s3 = inlined_call_operand.vmem [shape: f32[32,1], index: 3, kind: input, shape index: {}]
  %s4 = inlined_call_operand.hbm [shape: bf16[32,288], index: 4, kind: input, shape index: {}]
  %s5 = inlined_call_operand.vmem [shape: bf16[32,32], index: 5, kind: input, shape index: {}]
  %s6 = inlined_call_operand.vmem [shape: f32[32,1], index: 6, kind: input, shape index: {}]
  %s7 = inlined_call_operand.hbm [shape: f32[2,32,288], index: 7, kind: output, shape index: {}]
  %s8 = sld [smem:[#allocation0]]
  $region69: #{tpu_custom_call.1} parent=0
    _
  %s10 = ssub.s32 1, %s8
  %s11 = scalar_select 0, %s10, %s8
  $region1: #{tpu_custom_call.1} parent=0
    #allocation5 [shape = 'u8[49152]{0}', space=vmem, size = 0xc000, scoped, tag = 'input window, operand 0']
    #allocation6 [shape = 's32[2]{0}', space=sflag, size = 0x8, scoped, tag = 'scoped memory for tpu_custom_call.1']
    #allocation7 [shape = 's32[2]{0}', space=sflag, size = 0x8, scoped, tag = 'scoped memory for tpu_custom_call.1']
    #allocation8 [shape = 'u8[24576]{0}', space=vmem, size = 0x6000, scoped, tag = 'input window, operand 4, single buffered']
    #allocation9 [shape = 's32[1]{0}', space=sflag, size = 0x4, scoped, tag = 'scoped memory for tpu_custom_call.1']
    #allocation10 [shape = 'u8[98304]{0}', space=vmem, size = 0x18000, scoped, tag = 'output window, operand 0']
    %12 = vsyncpa [#allocation6], 0
    %s13 = scalar_lea.sflag [#allocation6], 1
    %14 = vsyncpa %s13, 0
    %15 = vsyncpa [#allocation9], 0
    %16 = vsyncpa [#allocation7], 0
    %s17 = scalar_lea.sflag [#allocation7], 1
    %18 = vsyncpa %s17, 0
    loop: start=0, step=1, limit=4
    $region2: #{tpu_custom_call.1} parent=1 // loop_pre_header
      _
    $region3: #{tpu_custom_call.1} parent=1 // loop_header
      %s20 = sphi 0, %s24
      %p21 = scmp.ge.s32.totalorder %s20, 4
      %s30 = sphi 0, %s32
      %s33 = sphi 0, %s30
      %s34 = sphi 0, %s33
      %s50 = sphi 0, %s34
      %s54 = sphi 0, %s54
      %s56 = sphi 0, %s54
      %s57 = sphi 0, %s56
      %s71 = sphi 0, %s57
      %s75 = sphi 0, %s75
      %s77 = sphi 0, %s75
      %s78 = sphi 0, %s77
      %s92 = sphi 0, %s78
      %s96 = sphi 0, %s96
      %s98 = sphi 0, %s96
      %s99 = sphi 0, %s98
      %s113 = sphi 0, %s99
      %s117 = sphi 0, %s117
      %s119 = sphi 0, %s117
      %s120 = sphi 0, %s119
      %s134 = sphi 0, %s120
      %s138 = sphi 0, %s138
      %s140 = sphi 0, %s138
      %s141 = sphi 0, %s140
      %s155 = sphi 0, %s141
      %s159 = sphi 0, %s159
      %s161 = sphi 0, %s159
      %s162 = sphi 0, %s161
      %s176 = sphi 0, %s162
      %s182 = sphi 0, %s184
      %s185 = sphi 0, %s182
      %s186 = sphi 0, %s185
      %s202 = sphi 0, %s186
    $region4: #{tpu_custom_call.1} parent=1 // loop_header_branch
      %23 = sbr.rel (%p21) target = $region8
    $region5: #{tpu_custom_call.1} parent=1 // loop_body
      %s25 = ssub.s32 %s20, 1
      %s26 = ssub.s32 %s20, 2
      %s27 = sadd.s32 %s20, 1
      %s28 = ssub.s32 %s20, %s27
      %p29 = scmp.eq.s32.totalorder %s28, 0
      %s31 = sadd.s32 %s30, 1
      %s32 = scalar_select %p29, %s30, %s31
      %p35 = pneg %p29
      %p36 = scmp.eq.s32.totalorder %s20, 1
      %p37 = por %p35, %p36
      %p38 = scmp.ne.s32.totalorder %s30, %s33
      %p39 = scmp.eq.s32.totalorder %s20, 0
      %p40 = por %p38, %p39
      %p41 = scmp.ne.s32.totalorder %s30, %s33
      %p42 = scmp.eq.s32.totalorder %s25, 1
      %p43 = por %p41, %p42
      %p44 = scmp.ne.s32.totalorder %s33, %s34
      %p45 = scmp.eq.s32.totalorder %s25, 0
      %p46 = por %p44, %p45
      %p47 = scmp.ne.s32.totalorder %s33, %s34
      %p48 = scmp.eq.s32.totalorder %s26, 1
      %p49 = por %p47, %p48
      %p51 = scmp.ne.s32.totalorder %s34, %s50
      %p52 = scmp.eq.s32.totalorder %s26, 0
      %p53 = por %p51, %p52
      %s55 = sadd.s32 %s54, 1
      %p58 = scmp.eq.s32.totalorder %s20, 1
      %p59 = scmp.ne.s32.totalorder %s54, %s56
      %p60 = scmp.eq.s32.totalorder %s20, 0
      %p61 = por %p59, %p60
      %p62 = scmp.ne.s32.totalorder %s54, %s56
      %p63 = scmp.eq.s32.totalorder %s25, 1
      %p64 = por %p62, %p63
      %p65 = scmp.ne.s32.totalorder %s56, %s57
      %p66 = scmp.eq.s32.totalorder %s25, 0
      %p67 = por %p65, %p66
      %p68 = scmp.ne.s32.totalorder %s56, %s57
      %p69 = scmp.eq.s32.totalorder %s26, 1
      %p70 = por %p68, %p69
      %p72 = scmp.ne.s32.totalorder %s57, %s71
      %p73 = scmp.eq.s32.totalorder %s26, 0
      %p74 = por %p72, %p73
      %s76 = sadd.s32 %s75, 1
      %p79 = scmp.eq.s32.totalorder %s20, 1
      %p80 = scmp.ne.s32.totalorder %s75, %s77
      %p81 = scmp.eq.s32.totalorder %s20, 0
      %p82 = por %p80, %p81
      %p83 = scmp.ne.s32.totalorder %s75, %s77
      %p84 = scmp.eq.s32.totalorder %s25, 1
      %p85 = por %p83, %p84
      %p86 = scmp.ne.s32.totalorder %s77, %s78
      %p87 = scmp.eq.s32.totalorder %s25, 0
      %p88 = por %p86, %p87
      %p89 = scmp.ne.s32.totalorder %s77, %s78
      %p90 = scmp.eq.s32.totalorder %s26, 1
      %p91 = por %p89, %p90
      %p93 = scmp.ne.s32.totalorder %s78, %s92
      %p94 = scmp.eq.s32.totalorder %s26, 0
      %p95 = por %p93, %p94
      %s97 = sadd.s32 %s96, 1
      %p100 = scmp.eq.s32.totalorder %s20, 1
      %p101 = scmp.ne.s32.totalorder %s96, %s98
      %p102 = scmp.eq.s32.totalorder %s20, 0
      %p103 = por %p101, %p102
      %p104 = scmp.ne.s32.totalorder %s96, %s98
      %p105 = scmp.eq.s32.totalorder %s25, 1
      %p106 = por %p104, %p105
      %p107 = scmp.ne.s32.totalorder %s98, %s99
      %p108 = scmp.eq.s32.totalorder %s25, 0
      %p109 = por %p107, %p108
      %p110 = scmp.ne.s32.totalorder %s98, %s99
      %p111 = scmp.eq.s32.totalorder %s26, 1
      %p112 = por %p110, %p111
      %p114 = scmp.ne.s32.totalorder %s99, %s113
      %p115 = scmp.eq.s32.totalorder %s26, 0
      %p116 = por %p114, %p115
      %s118 = sadd.s32 %s117, 1
      %p121 = scmp.eq.s32.totalorder %s20, 1
      %p122 = scmp.ne.s32.totalorder %s117, %s119
      %p123 = scmp.eq.s32.totalorder %s20, 0
      %p124 = por %p122, %p123
      %p125 = scmp.ne.s32.totalorder %s117, %s119
      %p126 = scmp.eq.s32.totalorder %s25, 1
      %p127 = por %p125, %p126
      %p128 = scmp.ne.s32.totalorder %s119, %s120
      %p129 = scmp.eq.s32.totalorder %s25, 0
      %p130 = por %p128, %p129
      %p131 = scmp.ne.s32.totalorder %s119, %s120
      %p132 = scmp.eq.s32.totalorder %s26, 1
      %p133 = por %p131, %p132
      %p135 = scmp.ne.s32.totalorder %s120, %s134
      %p136 = scmp.eq.s32.totalorder %s26, 0
      %p137 = por %p135, %p136
      %s139 = sadd.s32 %s138, 1
      %p142 = scmp.eq.s32.totalorder %s20, 1
      %p143 = scmp.ne.s32.totalorder %s138, %s140
      %p144 = scmp.eq.s32.totalorder %s20, 0
      %p145 = por %p143, %p144
      %p146 = scmp.ne.s32.totalorder %s138, %s140
      %p147 = scmp.eq.s32.totalorder %s25, 1
      %p148 = por %p146, %p147
      %p149 = scmp.ne.s32.totalorder %s140, %s141
      %p150 = scmp.eq.s32.totalorder %s25, 0
      %p151 = por %p149, %p150
      %p152 = scmp.ne.s32.totalorder %s140, %s141
      %p153 = scmp.eq.s32.totalorder %s26, 1
      %p154 = por %p152, %p153
      %p156 = scmp.ne.s32.totalorder %s141, %s155
      %p157 = scmp.eq.s32.totalorder %s26, 0
      %p158 = por %p156, %p157
      %s160 = sadd.s32 %s159, 1
      %p163 = scmp.eq.s32.totalorder %s20, 1
      %p164 = scmp.ne.s32.totalorder %s159, %s161
      %p165 = scmp.eq.s32.totalorder %s20, 0
      %p166 = por %p164, %p165
      %p167 = scmp.ne.s32.totalorder %s159, %s161
      %p168 = scmp.eq.s32.totalorder %s25, 1
      %p169 = por %p167, %p168
      %p170 = scmp.ne.s32.totalorder %s161, %s162
      %p171 = scmp.eq.s32.totalorder %s25, 0
      %p172 = por %p170, %p171
      %p173 = scmp.ne.s32.totalorder %s161, %s162
      %p174 = scmp.eq.s32.totalorder %s26, 1
      %p175 = por %p173, %p174
      %p177 = scmp.ne.s32.totalorder %s162, %s176
      %p178 = scmp.eq.s32.totalorder %s26, 0
      %p179 = por %p177, %p178
      %s180 = ssub.s32 %s20, %s27
      %p181 = scmp.eq.s32.totalorder %s180, 0
      %s183 = sadd.s32 %s182, 1
      %s184 = scalar_select %p181, %s182, %s183
      %p187 = pneg %p181
      %p188 = scmp.eq.s32.totalorder %s20, 1
      %p189 = por %p187, %p188
      %p190 = scmp.ne.s32.totalorder %s182, %s185
      %p191 = scmp.eq.s32.totalorder %s20, 0
      %p192 = por %p190, %p191
      %p193 = scmp.ne.s32.totalorder %s182, %s185
      %p194 = scmp.eq.s32.totalorder %s25, 1
      %p195 = por %p193, %p194
      %p196 = scmp.ne.s32.totalorder %s185, %s186
      %p197 = scmp.eq.s32.totalorder %s25, 0
      %p198 = por %p196, %p197
      %p199 = scmp.ne.s32.totalorder %s185, %s186
      %p200 = scmp.eq.s32.totalorder %s26, 1
      %p201 = por %p199, %p200
      %p203 = scmp.ne.s32.totalorder %s186, %s202
      %p204 = scmp.eq.s32.totalorder %s26, 0
      %p205 = por %p203, %p204
      %p206 = scmp.le.s32.totalorder 1, %s20
      %p207 = scmp.lt.s32.totalorder %s20, 3
      %p208 = pnand %p206, %p207
      %p209 = pneg %p208
      // Predicated region
      $region9: #{tpu_custom_call.1} parent=5 // pred_check
        _
      $region10: #{tpu_custom_call.1} parent=5 // pred_check_branch
        %211 = sbr.rel (%p208) target = $region12
      $region11: #{tpu_custom_call.1} parent=5 // pred_region
        %s212 = ssub.s32 %s20, 1
        // Predicated region
        $region13: #{tpu_custom_call.1} parent=11 // pred_check
          %p213 = pneg %p67
        $region14: #{tpu_custom_call.1} parent=11 // pred_check_branch
          %215 = sbr.rel (%p213) target = $region16
        $region15: #{tpu_custom_call.1} parent=11 // pred_region
          _
        $region16: #{tpu_custom_call.1} parent=11 // pred_fallthru
          _
        // Predicated region
        $region17: #{tpu_custom_call.1} parent=11 // pred_check
          %p216 = pneg %p88
        $region18: #{tpu_custom_call.1} parent=11 // pred_check_branch
          %218 = sbr.rel (%p216) target = $region20
        $region19: #{tpu_custom_call.1} parent=11 // pred_region
          _
        $region20: #{tpu_custom_call.1} parent=11 // pred_fallthru
          _
        // Predicated region
        $region21: #{tpu_custom_call.1} parent=11 // pred_check
          %p219 = pneg %p109
        $region22: #{tpu_custom_call.1} parent=11 // pred_check_branch
          %221 = sbr.rel (%p219) target = $region24
        $region23: #{tpu_custom_call.1} parent=11 // pred_region
          _
        $region24: #{tpu_custom_call.1} parent=11 // pred_fallthru
          _
        // Predicated region
        $region25: #{tpu_custom_call.1} parent=11 // pred_check
          %p222 = pneg %p130
        $region26: #{tpu_custom_call.1} parent=11 // pred_check_branch
          %224 = sbr.rel (%p222) target = $region28
        $region27: #{tpu_custom_call.1} parent=11 // pred_region
          %s226 = ssub.s32 768, 768
          %227 = vsyncadd [#allocation9], %s226
          %s228 = sshll.u32 [#allocation8], 4
          %s229 = int_to_ptr.vmem [resolvable:$true] %s228
          %234 = dma.hbm_to_vmem [thread:$0]  %s4, 768, %s229, [#allocation9], 192, 192, 12
        $region28: #{tpu_custom_call.1} parent=11 // pred_fallthru
          _
        // Predicated region
        $region29: #{tpu_custom_call.1} parent=11 // pred_check
          %p235 = pneg %p151
        $region30: #{tpu_custom_call.1} parent=11 // pred_check_branch
          %237 = sbr.rel (%p235) target = $region32
        $region31: #{tpu_custom_call.1} parent=11 // pred_region
          _
        $region32: #{tpu_custom_call.1} parent=11 // pred_fallthru
          _
        // Predicated region
        $region33: #{tpu_custom_call.1} parent=11 // pred_check
          %p238 = pneg %p172
        $region34: #{tpu_custom_call.1} parent=11 // pred_check_branch
          %240 = sbr.rel (%p238) target = $region36
        $region35: #{tpu_custom_call.1} parent=11 // pred_region
          _
        $region36: #{tpu_custom_call.1} parent=11 // pred_fallthru
          _
      $region12: #{tpu_custom_call.1} parent=5 // pred_fallthru
        _
      %p241 = scmp.lt.s32.totalorder %s20, 2
      // Predicated region
      $region37: #{tpu_custom_call.1} parent=5 // pred_check
        %p242 = pneg %p241
      $region38: #{tpu_custom_call.1} parent=5 // pred_check_branch
        %244 = sbr.rel (%p242) target = $region40
      $region39: #{tpu_custom_call.1} parent=5 // pred_region
        // Predicated region
        $region41: #{tpu_custom_call.1} parent=39 // pred_check
          %p245 = pneg %p40
        $region42: #{tpu_custom_call.1} parent=39 // pred_check_branch
          %247 = sbr.rel (%p245) target = $region44
        $region43: #{tpu_custom_call.1} parent=39 // pred_region
          %s248 = sand.u32 %s30, 1
          %s249 = scalar_lea.sflag [#allocation6], %s248
          %s250 = sand.u32 %s30, 1
          %s251 = smul.addr %s250, 48
          %s252 = scalar_lea.vmem [#allocation5], %s251
          %s254 = ssub.s32 768, 768
          %255 = vsyncadd %s249, %s254
          %s256 = smul.addr %s20, 12
          %s257 = smul.addr %s256, 64
          %s258 = scalar_lea.hbm %s0, %s257
          %s259 = sshll.u32 %s252, 4
          %s260 = int_to_ptr.vmem [resolvable:$true] %s259
          %265 = dma.hbm_to_vmem [thread:$0]  %s258, 768, %s260, %s249, 192, 192, 12
        $region44: #{tpu_custom_call.1} parent=39 // pred_fallthru
          _
      $region40: #{tpu_custom_call.1} parent=5 // pred_fallthru
        _
      %p266 = scmp.le.s32.totalorder 1, %s20
      %p267 = scmp.lt.s32.totalorder %s20, 3
      %p268 = pnand %p266, %p267
      %p269 = pneg %p268
      // Predicated region
      $region45: #{tpu_custom_call.1} parent=5 // pred_check
        _
      $region46: #{tpu_custom_call.1} parent=5 // pred_check_branch
        %271 = sbr.rel (%p268) target = $region48
      $region47: #{tpu_custom_call.1} parent=5 // pred_region
        %s272 = ssub.s32 %s20, 1
        %s273 = sand.u32 %s33, 1
        %s274 = scalar_lea.sflag [#allocation6], %s273
        %s275 = sand.u32 %s33, 1
        %s276 = smul.addr %s275, 48
        %s277 = scalar_lea.vmem [#allocation5], %s276
        // Predicated region
        $region49: #{tpu_custom_call.1} parent=47 // pred_check
          %p278 = pneg %p46
        $region50: #{tpu_custom_call.1} parent=47 // pred_check_branch
          %280 = sbr.rel (%p278) target = $region52
        $region51: #{tpu_custom_call.1} parent=47 // pred_region
          %281 = dma.done %s274, 768
        $region52: #{tpu_custom_call.1} parent=47 // pred_fallthru
          _
        // Predicated region
        $region53: #{tpu_custom_call.1} parent=47 // pred_check
          %p282 = pneg %p130
        $region54: #{tpu_custom_call.1} parent=47 // pred_check_branch
          %284 = sbr.rel (%p282) target = $region56
        $region55: #{tpu_custom_call.1} parent=47 // pred_region
          %285 = dma.done [#allocation9], 768
        $region56: #{tpu_custom_call.1} parent=47 // pred_fallthru
          _
        %s286 = sand.u32 %s33, 1
        %s287 = scalar_lea.sflag [#allocation6], %s286
        %s288 = sand.u32 %s33, 1
        %s289 = smul.addr %s288, 48
        %s290 = scalar_lea.vmem [#allocation5], %s289
        %p291 = pneg %p46
        %p292 = pneg %p43
        %p293 = pneg %p67
        %p294 = pneg %p64
        %p295 = pneg %p88
        %p296 = pneg %p85
        %p297 = pneg %p109
        %p298 = pneg %p106
        %p299 = pneg %p130
        %p300 = pneg %p127
        %p301 = pneg %p151
        %p302 = pneg %p148
        %p303 = pneg %p172
        %p304 = pneg %p169
        %p305 = pneg %p198
        %p306 = pneg %p195
        %s307 = sand.u32 %s185, 1
        %s308 = scalar_lea.sflag [#allocation7], %s307
        %s309 = sand.u32 %s185, 1
        %s310 = smul.addr %s309, 96
        %s311 = scalar_lea.vmem [#allocation10], %s310
        %v313 = vld [vmem:[%s277] sm:$0xff]
        %v314 = vld [vmem:[%s277 + $0x8] sm:$0xf]
        %v315 = vld [vmem:[%s277 + $0xc] sm:$0xff]
        %v316 = vld [vmem:[%s277 + $0x14] sm:$0xf]
        %v317 = vld [vmem:[%s277 + $0x18] sm:$0xff]
        %v318 = vld [vmem:[%s277 + $0x20] sm:$0xf]
        %v319 = vld [vmem:[%s277 + $0x24] sm:$0xff]
        %v320 = vld [vmem:[%s277 + $0x2c] sm:$0xf]
        %321 = vst [vmem:[#allocation2] sm:$0xff] %v313
        %vm322 = vcmask 257024
        %323 = vst.msk [vmem:[#allocation2 + $0x8] sm:$0xf] %vm322, %v314
        %324 = vst [vmem:[#allocation2 + $0xc] sm:$0xff] %v315
        %325 = vst.msk [vmem:[#allocation2 + $0x14] sm:$0xf] %vm322, %v316
        %326 = vst [vmem:[#allocation2 + $0x18] sm:$0xff] %v317
        %327 = vst.msk [vmem:[#allocation2 + $0x20] sm:$0xf] %vm322, %v318
        %328 = vst [vmem:[#allocation2 + $0x24] sm:$0xff] %v319
        %329 = vst.msk [vmem:[#allocation2 + $0x2c] sm:$0xf] %vm322, %v320
        %338 = vrot.lane.b32.xlu0 %v313, 127
        %v339 = vpop.permute.xlu0 %338
        %340 = vrot.lane.b32.xlu0 %v314, 127
        %v341 = vpop.permute.xlu0 %340
        %342 = vrot.lane.b32.xlu0 %v315, 127
        %v343 = vpop.permute.xlu0 %342
        %344 = vrot.lane.b32.xlu0 %v316, 127
        %v345 = vpop.permute.xlu0 %344
        %346 = vrot.lane.b32.xlu0 %v317, 127
        %v347 = vpop.permute.xlu0 %346
        %348 = vrot.lane.b32.xlu0 %v318, 127
        %v349 = vpop.permute.xlu0 %348
        %350 = vrot.lane.b32.xlu0 %v319, 127
        %v351 = vpop.permute.xlu0 %350
        %352 = vrot.lane.b32.xlu0 %v320, 127
        %v353 = vpop.permute.xlu0 %352
        %v354 = vrot.slane %v339, 4
        %v355 = vrot.slane %v341, 4
        %v356 = vrot.slane %v343, 4
        %v357 = vrot.slane %v345, 4
        %v358 = vrot.slane %v347, 4
        %v359 = vrot.slane %v349, 4
        %v360 = vrot.slane %v351, 4
        %v361 = vrot.slane %v353, 4
        %vm362 = vcmask 1043456
        %v363 = vsel %vm362, %v354, %v355
        %vm364 = vcmask 1039360
        %v365 = vsel %vm364, %v339, %v363
        %v366 = vsel %vm362, %v356, %v357
        %v367 = vsel %vm364, %v343, %v366
        %v368 = vsel %vm362, %v358, %v359
        %v369 = vsel %vm364, %v347, %v368
        %v370 = vsel %vm362, %v360, %v361
        %v371 = vsel %vm364, %v351, %v370
        %380 = vst [vmem:[#allocation2 + $0x30] sm:$0xff] %v365
        %381 = vst.msk [vmem:[#allocation2 + $0x38] sm:$0xf] %vm322, %v341
        %382 = vst [vmem:[#allocation2 + $0x3c] sm:$0xff] %v367
        %383 = vst.msk [vmem:[#allocation2 + $0x44] sm:$0xf] %vm322, %v345
        %384 = vst [vmem:[#allocation2 + $0x48] sm:$0xff] %v369
        %385 = vst.msk [vmem:[#allocation2 + $0x50] sm:$0xf] %vm322, %v349
        %386 = vst [vmem:[#allocation2 + $0x54] sm:$0xff] %v371
        %387 = vst.msk [vmem:[#allocation2 + $0x5c] sm:$0xf] %vm322, %v353
        %388 = vrot.lane.b32.xlu0 %v313, 126
        %v389 = vpop.permute.xlu0 %388
        %390 = vrot.lane.b32.xlu0 %v314, 126
        %v391 = vpop.permute.xlu0 %390
        %392 = vrot.lane.b32.xlu0 %v315, 126
        %v393 = vpop.permute.xlu0 %392
        %394 = vrot.lane.b32.xlu0 %v316, 126
        %v395 = vpop.permute.xlu0 %394
        %396 = vrot.lane.b32.xlu0 %v317, 126
        %v397 = vpop.permute.xlu0 %396
        %398 = vrot.lane.b32.xlu0 %v318, 126
        %v399 = vpop.permute.xlu0 %398
        %400 = vrot.lane.b32.xlu0 %v319, 126
        %v401 = vpop.permute.xlu0 %400
        %402 = vrot.lane.b32.xlu0 %v320, 126
        %v403 = vpop.permute.xlu0 %402
        %v404 = vrot.slane %v389, 4
        %v405 = vrot.slane %v391, 4
        %v406 = vrot.slane %v393, 4
        %v407 = vrot.slane %v395, 4
        %v408 = vrot.slane %v397, 4
        %v409 = vrot.slane %v399, 4
        %v410 = vrot.slane %v401, 4
        %v411 = vrot.slane %v403, 4
        %v412 = vsel %vm362, %v404, %v405
        %vm413 = vcmask 1031168
        %v414 = vsel %vm413, %v389, %v412
        %v415 = vsel %vm362, %v406, %v407
        %v416 = vsel %vm413, %v393, %v415
        %v417 = vsel %vm362, %v408, %v409
        %v418 = vsel %vm413, %v397, %v417
        %v419 = vsel %vm362, %v410, %v411
        %v420 = vsel %vm413, %v401, %v419
        %429 = vst [vmem:[#allocation2 + $0x60] sm:$0xff] %v414
        %430 = vst.msk [vmem:[#allocation2 + $0x68] sm:$0xf] %vm322, %v391
        %431 = vst [vmem:[#allocation2 + $0x6c] sm:$0xff] %v416
        %432 = vst.msk [vmem:[#allocation2 + $0x74] sm:$0xf] %vm322, %v395
        %433 = vst [vmem:[#allocation2 + $0x78] sm:$0xff] %v418
        %434 = vst.msk [vmem:[#allocation2 + $0x80] sm:$0xf] %vm322, %v399
        %435 = vst [vmem:[#allocation2 + $0x84] sm:$0xff] %v420
        %436 = vst.msk [vmem:[#allocation2 + $0x8c] sm:$0xf] %vm322, %v403
        %437 = vrot.lane.b32.xlu0 %v313, 110
        %v438 = vpop.permute.xlu0 %437
        %439 = vrot.lane.b32.xlu0 %v314, 110
        %v440 = vpop.permute.xlu0 %439
        %441 = vrot.lane.b32.xlu0 %v315, 110
        %v442 = vpop.permute.xlu0 %441
        %443 = vrot.lane.b32.xlu0 %v316, 110
        %v444 = vpop.permute.xlu0 %443
        %445 = vrot.lane.b32.xlu0 %v317, 110
        %v446 = vpop.permute.xlu0 %445
        %447 = vrot.lane.b32.xlu0 %v318, 110
        %v448 = vpop.permute.xlu0 %447
        %449 = vrot.lane.b32.xlu0 %v319, 110
        %v450 = vpop.permute.xlu0 %449
        %451 = vrot.lane.b32.xlu0 %v320, 110
        %v452 = vpop.permute.xlu0 %451
        %v453 = vrot.slane %v438, 4
        %v454 = vrot.slane %v440, 4
        %v455 = vrot.slane %v442, 4
        %v456 = vrot.slane %v444, 4
        %v457 = vrot.slane %v446, 4
        %v458 = vrot.slane %v448, 4
        %v459 = vrot.slane %v450, 4
        %v460 = vrot.slane %v452, 4
        %v461 = vsel %vm362, %v453, %v454
        %vm462 = vcmask 900096
        %v463 = vsel %vm462, %v438, %v461
        %v464 = vsel %vm362, %v455, %v456
        %v465 = vsel %vm462, %v442, %v464
        %v466 = vsel %vm362, %v457, %v458
        %v467 = vsel %vm462, %v446, %v466
        %v468 = vsel %vm362, %v459, %v460
        %v469 = vsel %vm462, %v450, %v468
        %478 = vst [vmem:[#allocation2 + $0x90] sm:$0xff] %v463
        %479 = vst.msk [vmem:[#allocation2 + $0x98] sm:$0xf] %vm322, %v440
        %480 = vst [vmem:[#allocation2 + $0x9c] sm:$0xff] %v465
        %481 = vst.msk [vmem:[#allocation2 + $0xa4] sm:$0xf] %vm322, %v444
        %482 = vst [vmem:[#allocation2 + $0xa8] sm:$0xff] %v467
        %483 = vst.msk [vmem:[#allocation2 + $0xb0] sm:$0xf] %vm322, %v448
        %484 = vst [vmem:[#allocation2 + $0xb4] sm:$0xff] %v469
        %485 = vst.msk [vmem:[#allocation2 + $0xbc] sm:$0xf] %vm322, %v452
        %486 = vrot.lane.b32.xlu0 %v313, 109
        %v487 = vpop.permute.xlu0 %486
        %488 = vrot.lane.b32.xlu0 %v314, 109
        %v489 = vpop.permute.xlu0 %488
        %490 = vrot.lane.b32.xlu0 %v315, 109
        %v491 = vpop.permute.xlu0 %490
        %492 = vrot.lane.b32.xlu0 %v316, 109
        %v493 = vpop.permute.xlu0 %492
        %494 = vrot.lane.b32.xlu0 %v317, 109
        %v495 = vpop.permute.xlu0 %494
        %496 = vrot.lane.b32.xlu0 %v318, 109
        %v497 = vpop.permute.xlu0 %496
        %498 = vrot.lane.b32.xlu0 %v319, 109
        %v499 = vpop.permute.xlu0 %498
        %500 = vrot.lane.b32.xlu0 %v320, 109
        %v501 = vpop.permute.xlu0 %500
        %v502 = vrot.slane %v487, 4
        %v503 = vrot.slane %v489, 4
        %v504 = vrot.slane %v491, 4
        %v505 = vrot.slane %v493, 4
        %v506 = vrot.slane %v495, 4
        %v507 = vrot.slane %v497, 4
        %v508 = vrot.slane %v499, 4
        %v509 = vrot.slane %v501, 4
        %v510 = vsel %vm362, %v502, %v503
        %vm511 = vcmask 891904
        %v512 = vsel %vm511, %v487, %v510
        %v513 = vsel %vm362, %v504, %v505
        %v514 = vsel %vm511, %v491, %v513
        %v515 = vsel %vm362, %v506, %v507
        %v516 = vsel %vm511, %v495, %v515
        %v517 = vsel %vm362, %v508, %v509
        %v518 = vsel %vm511, %v499, %v517
        %527 = vst [vmem:[#allocation2 + $0xc0] sm:$0xff] %v512
        %528 = vst.msk [vmem:[#allocation2 + $0xc8] sm:$0xf] %vm322, %v489
        %529 = vst [vmem:[#allocation2 + $0xcc] sm:$0xff] %v514
        %530 = vst.msk [vmem:[#allocation2 + $0xd4] sm:$0xf] %vm322, %v493
        %531 = vst [vmem:[#allocation2 + $0xd8] sm:$0xff] %v516
        %532 = vst.msk [vmem:[#allocation2 + $0xe0] sm:$0xf] %vm322, %v497
        %533 = vst [vmem:[#allocation2 + $0xe4] sm:$0xff] %v518
        %534 = vst.msk [vmem:[#allocation2 + $0xec] sm:$0xf] %vm322, %v501
        %535 = vrot.lane.b32.xlu0 %v313, 108
        %v536 = vpop.permute.xlu0 %535
        %537 = vrot.lane.b32.xlu0 %v314, 108
        %v538 = vpop.permute.xlu0 %537
        %539 = vrot.lane.b32.xlu0 %v315, 108
        %v540 = vpop.permute.xlu0 %539
        %541 = vrot.lane.b32.xlu0 %v316, 108
        %v542 = vpop.permute.xlu0 %541
        %543 = vrot.lane.b32.xlu0 %v317, 108
        %v544 = vpop.permute.xlu0 %543
        %545 = vrot.lane.b32.xlu0 %v318, 108
        %v546 = vpop.permute.xlu0 %545
        %547 = vrot.lane.b32.xlu0 %v319, 108
        %v548 = vpop.permute.xlu0 %547
        %549 = vrot.lane.b32.xlu0 %v320, 108
        %v550 = vpop.permute.xlu0 %549
        %v551 = vrot.slane %v536, 4
        %v552 = vrot.slane %v538, 4
        %v553 = vrot.slane %v540, 4
        %v554 = vrot.slane %v542, 4
        %v555 = vrot.slane %v544, 4
        %v556 = vrot.slane %v546, 4
        %v557 = vrot.slane %v548, 4
        %v558 = vrot.slane %v550, 4
        %v559 = vsel %vm362, %v551, %v552
        %vm560 = vcmask 883712
        %v561 = vsel %vm560, %v536, %v559
        %v562 = vsel %vm362, %v553, %v554
        %v563 = vsel %vm560, %v540, %v562
        %v564 = vsel %vm362, %v555, %v556
        %v565 = vsel %vm560, %v544, %v564
        %v566 = vsel %vm362, %v557, %v558
        %v567 = vsel %vm560, %v548, %v566
        %576 = vst [vmem:[#allocation2 + $0xf0] sm:$0xff] %v561
        %577 = vst.msk [vmem:[#allocation2 + $0xf8] sm:$0xf] %vm322, %v538
        %578 = vst [vmem:[#allocation2 + $0xfc] sm:$0xff] %v563
        %579 = vst.msk [vmem:[#allocation2 + $0x104] sm:$0xf] %vm322, %v542
        %580 = vst [vmem:[#allocation2 + $0x108] sm:$0xff] %v565
        %581 = vst.msk [vmem:[#allocation2 + $0x110] sm:$0xf] %vm322, %v546
        %582 = vst [vmem:[#allocation2 + $0x114] sm:$0xff] %v567
        %583 = vst.msk [vmem:[#allocation2 + $0x11c] sm:$0xf] %vm322, %v550
        %584 = vrot.lane.b32.xlu0 %v313, 92
        %v585 = vpop.permute.xlu0 %584
        %586 = vrot.lane.b32.xlu0 %v314, 92
        %v587 = vpop.permute.xlu0 %586
        %588 = vrot.lane.b32.xlu0 %v315, 92
        %v589 = vpop.permute.xlu0 %588
        %590 = vrot.lane.b32.xlu0 %v316, 92
        %v591 = vpop.permute.xlu0 %590
        %592 = vrot.lane.b32.xlu0 %v317, 92
        %v593 = vpop.permute.xlu0 %592
        %594 = vrot.lane.b32.xlu0 %v318, 92
        %v595 = vpop.permute.xlu0 %594
        %596 = vrot.lane.b32.xlu0 %v319, 92
        %v597 = vpop.permute.xlu0 %596
        %598 = vrot.lane.b32.xlu0 %v320, 92
        %v599 = vpop.permute.xlu0 %598
        %v600 = vrot.slane %v585, 4
        %v601 = vrot.slane %v587, 4
        %v602 = vrot.slane %v589, 4
        %v603 = vrot.slane %v591, 4
        %v604 = vrot.slane %v593, 4
        %v605 = vrot.slane %v595, 4
        %v606 = vrot.slane %v597, 4
        %v607 = vrot.slane %v599, 4
        %v608 = vsel %vm362, %v600, %v601
        %vm609 = vcmask 752640
        %v610 = vsel %vm609, %v585, %v608
        %v611 = vsel %vm362, %v602, %v603
        %v612 = vsel %vm609, %v589, %v611
        %v613 = vsel %vm362, %v604, %v605
        %v614 = vsel %vm609, %v593, %v613
        %v615 = vsel %vm362, %v606, %v607
        %v616 = vsel %vm609, %v597, %v615
        %625 = vst [vmem:[#allocation2 + $0x120] sm:$0xff] %v610
        %626 = vst.msk [vmem:[#allocation2 + $0x128] sm:$0xf] %vm322, %v587
        %627 = vst [vmem:[#allocation2 + $0x12c] sm:$0xff] %v612
        %628 = vst.msk [vmem:[#allocation2 + $0x134] sm:$0xf] %vm322, %v591
        %629 = vst [vmem:[#allocation2 + $0x138] sm:$0xff] %v614
        %630 = vst.msk [vmem:[#allocation2 + $0x140] sm:$0xf] %vm322, %v595
        %631 = vst [vmem:[#allocation2 + $0x144] sm:$0xff] %v616
        %632 = vst.msk [vmem:[#allocation2 + $0x14c] sm:$0xf] %vm322, %v599
        %633 = vrot.lane.b32.xlu0 %v313, 91
        %v634 = vpop.permute.xlu0 %633
        %635 = vrot.lane.b32.xlu0 %v314, 91
        %v636 = vpop.permute.xlu0 %635
        %637 = vrot.lane.b32.xlu0 %v315, 91
        %v638 = vpop.permute.xlu0 %637
        %639 = vrot.lane.b32.xlu0 %v316, 91
        %v640 = vpop.permute.xlu0 %639
        %641 = vrot.lane.b32.xlu0 %v317, 91
        %v642 = vpop.permute.xlu0 %641
        %643 = vrot.lane.b32.xlu0 %v318, 91
        %v644 = vpop.permute.xlu0 %643
        %645 = vrot.lane.b32.xlu0 %v319, 91
        %v646 = vpop.permute.xlu0 %645
        %647 = vrot.lane.b32.xlu0 %v320, 91
        %v648 = vpop.permute.xlu0 %647
        %v649 = vrot.slane %v634, 4
        %v650 = vrot.slane %v636, 4
        %v651 = vrot.slane %v638, 4
        %v652 = vrot.slane %v640, 4
        %v653 = vrot.slane %v642, 4
        %v654 = vrot.slane %v644, 4
        %v655 = vrot.slane %v646, 4
        %v656 = vrot.slane %v648, 4
        %v657 = vsel %vm362, %v649, %v650
        %vm658 = vcmask 744448
        %v659 = vsel %vm658, %v634, %v657
        %v660 = vsel %vm362, %v651, %v652
        %v661 = vsel %vm658, %v638, %v660
        %v662 = vsel %vm362, %v653, %v654
        %v663 = vsel %vm658, %v642, %v662
        %v664 = vsel %vm362, %v655, %v656
        %v665 = vsel %vm658, %v646, %v664
        %674 = vst [vmem:[#allocation2 + $0x150] sm:$0xff] %v659
        %675 = vst.msk [vmem:[#allocation2 + $0x158] sm:$0xf] %vm322, %v636
        %676 = vst [vmem:[#allocation2 + $0x15c] sm:$0xff] %v661
        %677 = vst.msk [vmem:[#allocation2 + $0x164] sm:$0xf] %vm322, %v640
        %678 = vst [vmem:[#allocation2 + $0x168] sm:$0xff] %v663
        %679 = vst.msk [vmem:[#allocation2 + $0x170] sm:$0xf] %vm322, %v644
        %680 = vst [vmem:[#allocation2 + $0x174] sm:$0xff] %v665
        %681 = vst.msk [vmem:[#allocation2 + $0x17c] sm:$0xf] %vm322, %v648
        %682 = vrot.lane.b32.xlu0 %v313, 90
        %v683 = vpop.permute.xlu0 %682
        %684 = vrot.lane.b32.xlu0 %v314, 90
        %v685 = vpop.permute.xlu0 %684
        %686 = vrot.lane.b32.xlu0 %v315, 90
        %v687 = vpop.permute.xlu0 %686
        %688 = vrot.lane.b32.xlu0 %v316, 90
        %v689 = vpop.permute.xlu0 %688
        %690 = vrot.lane.b32.xlu0 %v317, 90
        %v691 = vpop.permute.xlu0 %690
        %692 = vrot.lane.b32.xlu0 %v318, 90
        %v693 = vpop.permute.xlu0 %692
        %694 = vrot.lane.b32.xlu0 %v319, 90
        %v695 = vpop.permute.xlu0 %694
        %696 = vrot.lane.b32.xlu0 %v320, 90
        %v697 = vpop.permute.xlu0 %696
        %v698 = vrot.slane %v683, 4
        %v699 = vrot.slane %v685, 4
        %v700 = vrot.slane %v687, 4
        %v701 = vrot.slane %v689, 4
        %v702 = vrot.slane %v691, 4
        %v703 = vrot.slane %v693, 4
        %v704 = vrot.slane %v695, 4
        %v705 = vrot.slane %v697, 4
        %v706 = vsel %vm362, %v698, %v699
        %vm707 = vcmask 736256
        %v708 = vsel %vm707, %v683, %v706
        %v709 = vsel %vm362, %v700, %v701
        %v710 = vsel %vm707, %v687, %v709
        %v711 = vsel %vm362, %v702, %v703
        %v712 = vsel %vm707, %v691, %v711
        %v713 = vsel %vm362, %v704, %v705
        %v714 = vsel %vm707, %v695, %v713
        %723 = vst [vmem:[#allocation2 + $0x180] sm:$0xff] %v708
        %724 = vst.msk [vmem:[#allocation2 + $0x188] sm:$0xf] %vm322, %v685
        %725 = vst [vmem:[#allocation2 + $0x18c] sm:$0xff] %v710
        %726 = vst.msk [vmem:[#allocation2 + $0x194] sm:$0xf] %vm322, %v689
        %727 = vst [vmem:[#allocation2 + $0x198] sm:$0xff] %v712
        %728 = vst.msk [vmem:[#allocation2 + $0x1a0] sm:$0xf] %vm322, %v693
        %729 = vst [vmem:[#allocation2 + $0x1a4] sm:$0xff] %v714
        %730 = vst.msk [vmem:[#allocation2 + $0x1ac] sm:$0xf] %vm322, %v697
        %v731 = vld [vmem:[%s2] sm:$0xff]
        %v732 = vld [vmem:[%s2 + $0x8] sm:$0xf]
        %v733 = vld [vmem:[%s2 + $0xc] sm:$0xff]
        %v734 = vld [vmem:[%s2 + $0x14] sm:$0xf]
        %v735 = vld [vmem:[%s2 + $0x18] sm:$0xff]
        %v736 = vld [vmem:[%s2 + $0x20] sm:$0xf]
        %v737 = vld [vmem:[%s2 + $0x24] sm:$0xff]
        %v738 = vld [vmem:[%s2 + $0x2c] sm:$0xf]
        %v739 = vld [vmem:[#allocation2] sm:$0xff]
        %v740 = vld [vmem:[#allocation2 + $0x8] sm:$0xf]
        %v741 = vld [vmem:[#allocation2 + $0xc] sm:$0xff]
        %v742 = vld [vmem:[#allocation2 + $0x14] sm:$0xf]
        %v743 = vld [vmem:[#allocation2 + $0x18] sm:$0xff]
        %v744 = vld [vmem:[#allocation2 + $0x20] sm:$0xf]
        %v745 = vld [vmem:[#allocation2 + $0x24] sm:$0xff]
        %v746 = vld [vmem:[#allocation2 + $0x2c] sm:$0xf]
        %v747 = vld [vmem:[#allocation2 + $0x30] sm:$0xff]
        %v748 = vld [vmem:[#allocation2 + $0x38] sm:$0xf]
        %v749 = vld [vmem:[#allocation2 + $0x3c] sm:$0xff]
        %v750 = vld [vmem:[#allocation2 + $0x44] sm:$0xf]
        %v751 = vld [vmem:[#allocation2 + $0x48] sm:$0xff]
        %v752 = vld [vmem:[#allocation2 + $0x50] sm:$0xf]
        %v753 = vld [vmem:[#allocation2 + $0x54] sm:$0xff]
        %v754 = vld [vmem:[#allocation2 + $0x5c] sm:$0xf]
        %v755 = vld [vmem:[#allocation2 + $0x60] sm:$0xff]
        %v756 = vld [vmem:[#allocation2 + $0x68] sm:$0xf]
        %v757 = vld [vmem:[#allocation2 + $0x6c] sm:$0xff]
        %v758 = vld [vmem:[#allocation2 + $0x74] sm:$0xf]
        %v759 = vld [vmem:[#allocation2 + $0x78] sm:$0xff]
        %v760 = vld [vmem:[#allocation2 + $0x80] sm:$0xf]
        %v761 = vld [vmem:[#allocation2 + $0x84] sm:$0xff]
        %v762 = vld [vmem:[#allocation2 + $0x8c] sm:$0xf]
        %v763 = vld [vmem:[#allocation2 + $0x90] sm:$0xff]
        %v764 = vld [vmem:[#allocation2 + $0x98] sm:$0xf]
        %v765 = vld [vmem:[#allocation2 + $0x9c] sm:$0xff]
        %v766 = vld [vmem:[#allocation2 + $0xa4] sm:$0xf]
        %v767 = vld [vmem:[#allocation2 + $0xa8] sm:$0xff]
        %v768 = vld [vmem:[#allocation2 + $0xb0] sm:$0xf]
        %v769 = vld [vmem:[#allocation2 + $0xb4] sm:$0xff]
        %v770 = vld [vmem:[#allocation2 + $0xbc] sm:$0xf]
        %v771 = vld [vmem:[#allocation2 + $0xc0] sm:$0xff]
        %v772 = vld [vmem:[#allocation2 + $0xc8] sm:$0xf]
        %v773 = vld [vmem:[#allocation2 + $0xcc] sm:$0xff]
        %v774 = vld [vmem:[#allocation2 + $0xd4] sm:$0xf]
        %v775 = vld [vmem:[#allocation2 + $0xd8] sm:$0xff]
        %v776 = vld [vmem:[#allocation2 + $0xe0] sm:$0xf]
        %v777 = vld [vmem:[#allocation2 + $0xe4] sm:$0xff]
        %v778 = vld [vmem:[#allocation2 + $0xec] sm:$0xf]
        %v779 = vld [vmem:[#allocation2 + $0xf0] sm:$0xff]
        %v780 = vld [vmem:[#allocation2 + $0xf8] sm:$0xf]
        %v781 = vld [vmem:[#allocation2 + $0xfc] sm:$0xff]
        %v782 = vld [vmem:[#allocation2 + $0x104] sm:$0xf]
        %v783 = vld [vmem:[#allocation2 + $0x108] sm:$0xff]
        %v784 = vld [vmem:[#allocation2 + $0x110] sm:$0xf]
        %v785 = vld [vmem:[#allocation2 + $0x114] sm:$0xff]
        %v786 = vld [vmem:[#allocation2 + $0x11c] sm:$0xf]
        %v787 = vld [vmem:[#allocation2 + $0x120] sm:$0xff]
        %v788 = vld [vmem:[#allocation2 + $0x128] sm:$0xf]
        %v789 = vld [vmem:[#allocation2 + $0x12c] sm:$0xff]
        %v790 = vld [vmem:[#allocation2 + $0x134] sm:$0xf]
        %v791 = vld [vmem:[#allocation2 + $0x138] sm:$0xff]
        %v792 = vld [vmem:[#allocation2 + $0x140] sm:$0xf]
        %v793 = vld [vmem:[#allocation2 + $0x144] sm:$0xff]
        %v794 = vld [vmem:[#allocation2 + $0x14c] sm:$0xf]
        %v795 = vld [vmem:[#allocation2 + $0x150] sm:$0xff]
        %v796 = vld [vmem:[#allocation2 + $0x158] sm:$0xf]
        %v797 = vld [vmem:[#allocation2 + $0x15c] sm:$0xff]
        %v798 = vld [vmem:[#allocation2 + $0x164] sm:$0xf]
        %v799 = vld [vmem:[#allocation2 + $0x168] sm:$0xff]
        %v800 = vld [vmem:[#allocation2 + $0x170] sm:$0xf]
        %v801 = vld [vmem:[#allocation2 + $0x174] sm:$0xff]
        %v802 = vld [vmem:[#allocation2 + $0x17c] sm:$0xf]
        %v803 = vld [vmem:[#allocation2 + $0x180] sm:$0xff]
        %v804 = vld [vmem:[#allocation2 + $0x188] sm:$0xf]
        %v805 = vld [vmem:[#allocation2 + $0x18c] sm:$0xff]
        %v806 = vld [vmem:[#allocation2 + $0x194] sm:$0xf]
        %v807 = vld [vmem:[#allocation2 + $0x198] sm:$0xff]
        %v808 = vld [vmem:[#allocation2 + $0x1a0] sm:$0xf]
        %v809 = vld [vmem:[#allocation2 + $0x1a4] sm:$0xff]
        %v810 = vld [vmem:[#allocation2 + $0x1ac] sm:$0xf]
        %v811 = vld [vmem:[%s3] sm:$0xff]
        %v812 = vld [vmem:[%s3 + $0x8] sm:$0xff]
        %v813 = vld [vmem:[%s3 + $0x10] sm:$0xff]
        %v814 = vld [vmem:[%s3 + $0x18] sm:$0xff]
        %816 = vset.pattern.permute.xlu0 0
        %817 = vperm.xlu0 %816, %v811
        %v818 = vpop.permute.xlu0 %817
        %821 = vset.pattern.permute.xlu0 0
        %822 = vperm.xlu0 %821, %v812
        %v823 = vpop.permute.xlu0 %822
        %826 = vset.pattern.permute.xlu0 0
        %827 = vperm.xlu0 %826, %v813
        %v828 = vpop.permute.xlu0 %827
        %831 = vset.pattern.permute.xlu0 0
        %832 = vperm.xlu0 %831, %v814
        %v833 = vpop.permute.xlu0 %832
        %v843 = vunpack.c.l.b16 %v731
        %v844 = vunpack.c.h.b16 %v731
        %v845 = vunpack.c.l.b16 %v732
        %v846 = vunpack.c.l.b16 %v733
        %v847 = vunpack.c.h.b16 %v733
        %v848 = vunpack.c.l.b16 %v734
        %v849 = vunpack.c.l.b16 %v735
        %v850 = vunpack.c.h.b16 %v735
        %v851 = vunpack.c.l.b16 %v736
        %v852 = vunpack.c.l.b16 %v737
        %v853 = vunpack.c.h.b16 %v737
        %v854 = vunpack.c.l.b16 %v738
        %v855 = vpack.c.b16 %v846, %v843
        %v856 = vpack.c.b16 %v847, %v844
        %v857 = vpack.c.b16 %v848, %v845
        %v858 = vpack.c.b16 %v852, %v849
        %v859 = vpack.c.b16 %v853, %v850
        %v860 = vpack.c.b16 %v854, %v851
        %v937 = vunpack.c.l.b16 %v739
        %v938 = vunpack.c.h.b16 %v739
        %v939 = vunpack.c.l.b16 %v740
        %v940 = vunpack.c.l.b16 %v741
        %v941 = vunpack.c.h.b16 %v741
        %v942 = vunpack.c.l.b16 %v742
        %v943 = vunpack.c.l.b16 %v743
        %v944 = vunpack.c.h.b16 %v743
        %v945 = vunpack.c.l.b16 %v744
        %v946 = vunpack.c.l.b16 %v745
        %v947 = vunpack.c.h.b16 %v745
        %v948 = vunpack.c.l.b16 %v746
        %v949 = vunpack.c.l.b16 %v747
        %v950 = vunpack.c.h.b16 %v747
        %v951 = vunpack.c.l.b16 %v748
        %v952 = vunpack.c.l.b16 %v749
        %v953 = vunpack.c.h.b16 %v749
        %v954 = vunpack.c.l.b16 %v750
        %v955 = vunpack.c.l.b16 %v751
        %v956 = vunpack.c.h.b16 %v751
        %v957 = vunpack.c.l.b16 %v752
        %v958 = vunpack.c.l.b16 %v753
        %v959 = vunpack.c.h.b16 %v753
        %v960 = vunpack.c.l.b16 %v754
        %v961 = vunpack.c.l.b16 %v755
        %v962 = vunpack.c.h.b16 %v755
        %v963 = vunpack.c.l.b16 %v756
        %v964 = vunpack.c.l.b16 %v757
        %v965 = vunpack.c.h.b16 %v757
        %v966 = vunpack.c.l.b16 %v758
        %v967 = vunpack.c.l.b16 %v759
        %v968 = vunpack.c.h.b16 %v759
        %v969 = vunpack.c.l.b16 %v760
        %v970 = vunpack.c.l.b16 %v761
        %v971 = vunpack.c.h.b16 %v761
        %v972 = vunpack.c.l.b16 %v762
        %v973 = vunpack.c.l.b16 %v763
        %v974 = vunpack.c.h.b16 %v763
        %v975 = vunpack.c.l.b16 %v764
        %v976 = vunpack.c.l.b16 %v765
        %v977 = vunpack.c.h.b16 %v765
        %v978 = vunpack.c.l.b16 %v766
        %v979 = vunpack.c.l.b16 %v767
        %v980 = vunpack.c.h.b16 %v767
        %v981 = vunpack.c.l.b16 %v768
        %v982 = vunpack.c.l.b16 %v769
        %v983 = vunpack.c.h.b16 %v769
        %v984 = vunpack.c.l.b16 %v770
        %v985 = vunpack.c.l.b16 %v771
        %v986 = vunpack.c.h.b16 %v771
        %v987 = vunpack.c.l.b16 %v772
        %v988 = vunpack.c.l.b16 %v773
        %v989 = vunpack.c.h.b16 %v773
        %v990 = vunpack.c.l.b16 %v774
        %v991 = vunpack.c.l.b16 %v775
        %v992 = vunpack.c.h.b16 %v775
        %v993 = vunpack.c.l.b16 %v776
        %v994 = vunpack.c.l.b16 %v777
        %v995 = vunpack.c.h.b16 %v777
        %v996 = vunpack.c.l.b16 %v778
        %v997 = vunpack.c.l.b16 %v779
        %v998 = vunpack.c.h.b16 %v779
        %v999 = vunpack.c.l.b16 %v780
        %v1000 = vunpack.c.l.b16 %v781
        %v1001 = vunpack.c.h.b16 %v781
        %v1002 = vunpack.c.l.b16 %v782
        %v1003 = vunpack.c.l.b16 %v783
        %v1004 = vunpack.c.h.b16 %v783
        %v1005 = vunpack.c.l.b16 %v784
        %v1006 = vunpack.c.l.b16 %v785
        %v1007 = vunpack.c.h.b16 %v785
        %v1008 = vunpack.c.l.b16 %v786
        %v1009 = vunpack.c.l.b16 %v787
        %v1010 = vunpack.c.h.b16 %v787
        %v1011 = vunpack.c.l.b16 %v788
        %v1012 = vunpack.c.l.b16 %v789
        %v1013 = vunpack.c.h.b16 %v789
        %v1014 = vunpack.c.l.b16 %v790
        %v1015 = vunpack.c.l.b16 %v791
        %v1016 = vunpack.c.h.b16 %v791
        %v1017 = vunpack.c.l.b16 %v792
        %v1018 = vunpack.c.l.b16 %v793
        %v1019 = vunpack.c.h.b16 %v793
        %v1020 = vunpack.c.l.b16 %v794
        %v1021 = vunpack.c.l.b16 %v795
        %v1022 = vunpack.c.h.b16 %v795
        %v1023 = vunpack.c.l.b16 %v796
        %v1024 = vunpack.c.l.b16 %v797
        %v1025 = vunpack.c.h.b16 %v797
        %v1026 = vunpack.c.l.b16 %v798
        %v1027 = vunpack.c.l.b16 %v799
        %v1028 = vunpack.c.h.b16 %v799
        %v1029 = vunpack.c.l.b16 %v800
        %v1030 = vunpack.c.l.b16 %v801
        %v1031 = vunpack.c.h.b16 %v801
        %v1032 = vunpack.c.l.b16 %v802
        %v1033 = vunpack.c.l.b16 %v803
        %v1034 = vunpack.c.h.b16 %v803
        %v1035 = vunpack.c.l.b16 %v804
        %v1036 = vunpack.c.l.b16 %v805
        %v1037 = vunpack.c.h.b16 %v805
        %v1038 = vunpack.c.l.b16 %v806
        %v1039 = vunpack.c.l.b16 %v807
        %v1040 = vunpack.c.h.b16 %v807
        %v1041 = vunpack.c.l.b16 %v808
        %v1042 = vunpack.c.l.b16 %v809
        %v1043 = vunpack.c.h.b16 %v809
        %v1044 = vunpack.c.l.b16 %v810
        %v1045 = vpack.c.b16 %v940, %v937
        %v1046 = vpack.c.b16 %v941, %v938
        %v1047 = vpack.c.b16 %v942, %v939
        %v1048 = vpack.c.b16 %v946, %v943
        %v1049 = vpack.c.b16 %v947, %v944
        %v1050 = vpack.c.b16 %v948, %v945
        %v1051 = vpack.c.b16 %v952, %v949
        %v1052 = vpack.c.b16 %v953, %v950
        %v1053 = vpack.c.b16 %v954, %v951
        %v1054 = vpack.c.b16 %v958, %v955
        %v1055 = vpack.c.b16 %v959, %v956
        %v1056 = vpack.c.b16 %v960, %v957
        %v1057 = vpack.c.b16 %v964, %v961
        %v1058 = vpack.c.b16 %v965, %v962
        %v1059 = vpack.c.b16 %v966, %v963
        %v1060 = vpack.c.b16 %v970, %v967
        %v1061 = vpack.c.b16 %v971, %v968
        %v1062 = vpack.c.b16 %v972, %v969
        %v1063 = vpack.c.b16 %v976, %v973
        %v1064 = vpack.c.b16 %v977, %v974
        %v1065 = vpack.c.b16 %v978, %v975
        %v1066 = vpack.c.b16 %v982, %v979
        %v1067 = vpack.c.b16 %v983, %v980
        %v1068 = vpack.c.b16 %v984, %v981
        %v1069 = vpack.c.b16 %v988, %v985
        %v1070 = vpack.c.b16 %v989, %v986
        %v1071 = vpack.c.b16 %v990, %v987
        %v1072 = vpack.c.b16 %v994, %v991
        %v1073 = vpack.c.b16 %v995, %v992
        %v1074 = vpack.c.b16 %v996, %v993
        %v1075 = vpack.c.b16 %v1000, %v997
        %v1076 = vpack.c.b16 %v1001, %v998
        %v1077 = vpack.c.b16 %v1002, %v999
        %v1078 = vpack.c.b16 %v1006, %v1003
        %v1079 = vpack.c.b16 %v1007, %v1004
        %v1080 = vpack.c.b16 %v1008, %v1005
        %v1081 = vpack.c.b16 %v1012, %v1009
        %v1082 = vpack.c.b16 %v1013, %v1010
        %v1083 = vpack.c.b16 %v1014, %v1011
        %v1084 = vpack.c.b16 %v1018, %v1015
        %v1085 = vpack.c.b16 %v1019, %v1016
        %v1086 = vpack.c.b16 %v1020, %v1017
        %v1087 = vpack.c.b16 %v1024, %v1021
        %v1088 = vpack.c.b16 %v1025, %v1022
        %v1089 = vpack.c.b16 %v1026, %v1023
        %v1090 = vpack.c.b16 %v1030, %v1027
        %v1091 = vpack.c.b16 %v1031, %v1028
        %v1092 = vpack.c.b16 %v1032, %v1029
        %v1093 = vpack.c.b16 %v1036, %v1033
        %v1094 = vpack.c.b16 %v1037, %v1034
        %v1095 = vpack.c.b16 %v1038, %v1035
        %v1096 = vpack.c.b16 %v1042, %v1039
        %v1097 = vpack.c.b16 %v1043, %v1040
        %v1098 = vpack.c.b16 %v1044, %v1041
        %vm1153 = vcmask 261120
        %v1155 = vsel %vm1153, %v857, 0
        %v1158 = vsel %vm1153, %v860, 0
        %1160 = vmatprep.subr.bf16.mxu0 %v1067
        %1161 = vmatpush1.bf16.msra.mxu0 %v1066
        %1162 = vmatprep.subr.bf16.mxu0 %v1064
        %1163 = vmatpush1.bf16.msra.mxu0 %v1063
        %1164 = vmatprep.subr.bf16.mxu0 %v1061
        %1165 = vmatpush1.bf16.msra.mxu0 %v1060
        %1166 = vmatprep.subr.bf16.mxu0 %v1058
        %1167 = vmatpush1.bf16.msra.mxu0 %v1057
        %1168 = vmatprep.subr.bf16.mxu0 %v1055
        %1169 = vmatpush1.bf16.msra.mxu0 %v1054
        %1170 = vmatprep.subr.bf16.mxu0 %v1052
        %1171 = vmatpush1.bf16.msra.mxu0 %v1051
        %1172 = vmatprep.subr.bf16.mxu0 %v1049
        %1173 = vmatpush1.bf16.msra.mxu0 %v1048
        %1174 = vmatprep.subr.bf16.mxu0 %v1046
        %1175 = vmatpush1.bf16.msra.mxu0 %v1045
        %1176 = vmatprep.subr.bf16.mxu0 %v1091
        %1177 = vmatpush2.bf16.msra.mxu0 %v1090
        %1178 = vmatprep.subr.bf16.mxu0 %v1088
        %1179 = vmatpush2.bf16.msra.mxu0 %v1087
        %1180 = vmatprep.subr.bf16.mxu0 %v1085
        %1181 = vmatpush2.bf16.msra.mxu0 %v1084
        %1182 = vmatprep.subr.bf16.mxu0 %v1082
        %1183 = vmatpush2.bf16.msra.mxu0 %v1081
        %1184 = vmatprep.subr.bf16.mxu0 %v1079
        %1185 = vmatpush2.bf16.msra.mxu0 %v1078
        %1186 = vmatprep.subr.bf16.mxu0 %v1076
        %1187 = vmatpush2.bf16.msra.mxu0 %v1075
        %1188 = vmatprep.subr.bf16.mxu0 %v1073
        %1189 = vmatpush2.bf16.msra.mxu0 %v1072
        %1190 = vmatprep.subr.bf16.mxu0 %v1070
        %1191 = vmatpush2.bf16.msra.mxu0 %v1069
        %1192 = vmatprep.mubr.bf16.mxu0 %v856
        %1193 = vmatmul.mubr.bf16.gmra.mxu0 %v855
        %v1194 = vpop.f32.mrf.mxu0
        %v1195 = vadd.f32 %v818, %v1194
        %v1196 = vpop.f32.mrf.mxu0
        %v1197 = vadd.f32 %v818, %v1196
        %v1198 = vpop.f32.mrf.mxu0
        %v1199 = vadd.f32 %v823, %v1198
        %v1200 = vpop.f32.mrf.mxu0
        %v1201 = vadd.f32 %v823, %v1200
        %1202 = vmatprep.mubr.bf16.mxu0 %v859
        %1203 = vmatmul.mubr.bf16.gmra.mxu0 %v858
        %v1204 = vpop.f32.mrf.mxu0
        %v1205 = vadd.f32 %v828, %v1204
        %v1206 = vpop.f32.mrf.mxu0
        %v1207 = vadd.f32 %v828, %v1206
        %v1208 = vpop.f32.mrf.mxu0
        %v1209 = vadd.f32 %v833, %v1208
        %v1210 = vpop.f32.mrf.mxu0
        %v1211 = vadd.f32 %v833, %v1210
        %1212 = vdwg.mxu0
        %1213 = vmatprep.subr.bf16.mxu0 0
        %1214 = vmatpush1.bf16.msra.mxu0 0
        %1215 = vmatprep.subr.bf16.mxu0 0
        %1216 = vmatpush1.bf16.msra.mxu0 0
        %1217 = vmatprep.subr.bf16.mxu0 0
        %1218 = vmatpush1.bf16.msra.mxu0 0
        %1219 = vmatprep.subr.bf16.mxu0 0
        %1220 = vmatpush1.bf16.msra.mxu0 0
        %1221 = vmatprep.subr.bf16.mxu0 0
        %1222 = vmatpush1.bf16.msra.mxu0 0
        %1223 = vmatprep.subr.bf16.mxu0 0
        %1224 = vmatpush1.bf16.msra.mxu0 0
        %1225 = vmatprep.subr.bf16.mxu0 %v1097
        %1226 = vmatpush1.bf16.msra.mxu0 %v1096
        %1227 = vmatprep.subr.bf16.mxu0 %v1094
        %1228 = vmatpush1.bf16.msra.mxu0 %v1093
        %1229 = vmatprep.subr.bf16.mxu0 0
        %1230 = vmatpush2.bf16.msra.mxu0 0
        %1231 = vmatprep.subr.bf16.mxu0 0
        %1232 = vmatpush2.bf16.msra.mxu0 0
        %1233 = vmatprep.subr.bf16.mxu0 0
        %1234 = vmatpush2.bf16.msra.mxu0 0
        %1235 = vmatprep.subr.bf16.mxu0 0
        %1236 = vmatpush2.bf16.msra.mxu0 0
        %1237 = vmatprep.subr.bf16.mxu0 0
        %1238 = vmatpush2.bf16.msra.mxu0 0
        %1239 = vmatprep.subr.bf16.mxu0 0
        %1240 = vmatpush2.bf16.msra.mxu0 0
        %1241 = vmatprep.subr.bf16.mxu0 0
        %1242 = vmatpush2.bf16.msra.mxu0 0
        %1243 = vmatprep.subr.bf16.mxu0 0
        %1244 = vmatpush2.bf16.msra.mxu0 0
        %1245 = vmatprep.mubr.bf16.mxu0 0
        %1246 = vmatmul.mubr.bf16.gmra.mxu0 %v1155
        %v1247 = vpop.f32.mrf.mxu0
        %v1248 = vadd.f32 %v1195, %v1247
        %v1249 = vpop.f32.mrf.mxu0
        %v1250 = vadd.f32 %v1197, %v1249
        %v1251 = vpop.f32.mrf.mxu0
        %v1252 = vadd.f32 %v1199, %v1251
        %v1253 = vpop.f32.mrf.mxu0
        %v1254 = vadd.f32 %v1201, %v1253
        %1255 = vmatprep.mubr.bf16.mxu0 0
        %1256 = vmatmul.mubr.bf16.gmra.mxu0 %v1158
        %v1257 = vpop.f32.mrf.mxu0
        %v1258 = vadd.f32 %v1205, %v1257
        %v1259 = vpop.f32.mrf.mxu0
        %v1260 = vadd.f32 %v1207, %v1259
        %v1261 = vpop.f32.mrf.mxu0
        %v1262 = vadd.f32 %v1209, %v1261
        %v1263 = vpop.f32.mrf.mxu0
        %v1264 = vadd.f32 %v1211, %v1263
        %1265 = vdwg.mxu0
        %1266 = vmatprep.subr.bf16.mxu0 0
        %1267 = vmatpush1.bf16.msra.mxu0 %v1068
        %1268 = vmatprep.subr.bf16.mxu0 0
        %1269 = vmatpush1.bf16.msra.mxu0 %v1065
        %1270 = vmatprep.subr.bf16.mxu0 0
        %1271 = vmatpush1.bf16.msra.mxu0 %v1062
        %1272 = vmatprep.subr.bf16.mxu0 0
        %1273 = vmatpush1.bf16.msra.mxu0 %v1059
        %1274 = vmatprep.subr.bf16.mxu0 0
        %1275 = vmatpush1.bf16.msra.mxu0 %v1056
        %1276 = vmatprep.subr.bf16.mxu0 0
        %1277 = vmatpush1.bf16.msra.mxu0 %v1053
        %1278 = vmatprep.subr.bf16.mxu0 0
        %1279 = vmatpush1.bf16.msra.mxu0 %v1050
        %1280 = vmatprep.subr.bf16.mxu0 0
        %1281 = vmatpush1.bf16.msra.mxu0 %v1047
        %1282 = vmatprep.subr.bf16.mxu0 0
        %1283 = vmatpush2.bf16.msra.mxu0 %v1092
        %1284 = vmatprep.subr.bf16.mxu0 0
        %1285 = vmatpush2.bf16.msra.mxu0 %v1089
        %1286 = vmatprep.subr.bf16.mxu0 0
        %1287 = vmatpush2.bf16.msra.mxu0 %v1086
        %1288 = vmatprep.subr.bf16.mxu0 0
        %1289 = vmatpush2.bf16.msra.mxu0 %v1083
        %1290 = vmatprep.subr.bf16.mxu0 0
        %1291 = vmatpush2.bf16.msra.mxu0 %v1080
        %1292 = vmatprep.subr.bf16.mxu0 0
        %1293 = vmatpush2.bf16.msra.mxu0 %v1077
        %1294 = vmatprep.subr.bf16.mxu0 0
        %1295 = vmatpush2.bf16.msra.mxu0 %v1074
        %1296 = vmatprep.subr.bf16.mxu0 0
        %1297 = vmatpush2.bf16.msra.mxu0 %v1071
        %1298 = vmatprep.mubr.bf16.mxu0 %v856
        %1299 = vmatmul.mubr.bf16.gmra.mxu0 %v855
        %v1300 = vpop.f32.mrf.mxu0
        %v1301 = vadd.f32 %v818, %v1300
        %v1302 = vpop.f32.mrf.mxu0
        %v1303 = vpop.f32.mrf.mxu0
        %v1304 = vadd.f32 %v823, %v1303
        %v1305 = vpop.f32.mrf.mxu0
        %1306 = vmatprep.mubr.bf16.mxu0 %v859
        %1307 = vmatmul.mubr.bf16.gmra.mxu0 %v858
        %v1308 = vpop.f32.mrf.mxu0
        %v1309 = vadd.f32 %v828, %v1308
        %v1310 = vpop.f32.mrf.mxu0
        %v1311 = vpop.f32.mrf.mxu0
        %v1312 = vadd.f32 %v833, %v1311
        %v1313 = vpop.f32.mrf.mxu0
        %1314 = vdwg.mxu0
        %1315 = vmatprep.subr.bf16.mxu0 0
        %1316 = vmatpush1.bf16.msra.mxu0 0
        %1317 = vmatprep.subr.bf16.mxu0 0
        %1318 = vmatpush1.bf16.msra.mxu0 0
        %1319 = vmatprep.subr.bf16.mxu0 0
        %1320 = vmatpush1.bf16.msra.mxu0 0
        %1321 = vmatprep.subr.bf16.mxu0 0
        %1322 = vmatpush1.bf16.msra.mxu0 0
        %1323 = vmatprep.subr.bf16.mxu0 0
        %1324 = vmatpush1.bf16.msra.mxu0 0
        %1325 = vmatprep.subr.bf16.mxu0 0
        %1326 = vmatpush1.bf16.msra.mxu0 0
        %1327 = vmatprep.subr.bf16.mxu0 0
        %1328 = vmatpush1.bf16.msra.mxu0 %v1098
        %1329 = vmatprep.subr.bf16.mxu0 0
        %1330 = vmatpush1.bf16.msra.mxu0 %v1095
        %1331 = vmatprep.subr.bf16.mxu0 0
        %1332 = vmatpush2.bf16.msra.mxu0 0
        %1333 = vmatprep.subr.bf16.mxu0 0
        %1334 = vmatpush2.bf16.msra.mxu0 0
        %1335 = vmatprep.subr.bf16.mxu0 0
        %1336 = vmatpush2.bf16.msra.mxu0 0
        %1337 = vmatprep.subr.bf16.mxu0 0
        %1338 = vmatpush2.bf16.msra.mxu0 0
        %1339 = vmatprep.subr.bf16.mxu0 0
        %1340 = vmatpush2.bf16.msra.mxu0 0
        %1341 = vmatprep.subr.bf16.mxu0 0
        %1342 = vmatpush2.bf16.msra.mxu0 0
        %1343 = vmatprep.subr.bf16.mxu0 0
        %1344 = vmatpush2.bf16.msra.mxu0 0
        %1345 = vmatprep.subr.bf16.mxu0 0
        %1346 = vmatpush2.bf16.msra.mxu0 0
        %1347 = vmatprep.mubr.bf16.mxu0 0
        %1348 = vmatmul.mubr.bf16.gmra.mxu0 %v1155
        %v1349 = vpop.f32.mrf.mxu0
        %v1350 = vadd.f32 %v1301, %v1349
        %v1351 = vpop.f32.mrf.mxu0
        %v1352 = vpop.f32.mrf.mxu0
        %v1353 = vadd.f32 %v1304, %v1352
        %v1354 = vpop.f32.mrf.mxu0
        %1355 = vmatprep.mubr.bf16.mxu0 0
        %1356 = vmatmul.mubr.bf16.gmra.mxu0 %v1158
        %v1357 = vpop.f32.mrf.mxu0
        %v1358 = vadd.f32 %v1309, %v1357
        %v1359 = vpop.f32.mrf.mxu0
        %v1360 = vpop.f32.mrf.mxu0
        %v1361 = vadd.f32 %v1312, %v1360
        %v1362 = vpop.f32.mrf.mxu0
        %1363 = vdwg.mxu0
        %v1364 = vmax.f32 %v1248, 0.0
        %v1365 = vmax.f32 %v1250, 0.0
        %v1366 = vmax.f32 %v1350, 0.0
        %v1367 = vmax.f32 %v1252, 0.0
        %v1368 = vmax.f32 %v1254, 0.0
        %v1369 = vmax.f32 %v1353, 0.0
        %v1370 = vmax.f32 %v1258, 0.0
        %v1371 = vmax.f32 %v1260, 0.0
        %v1372 = vmax.f32 %v1358, 0.0
        %v1373 = vmax.f32 %v1262, 0.0
        %v1374 = vmax.f32 %v1264, 0.0
        %v1375 = vmax.f32 %v1361, 0.0
        %v1376 = vld [vmem:[%s1] sm:$0x7]
        %v1378 = vlaneseq
        %v1379 = vshrl.u32 %v1378, 7
        %v1380 = vsub.s32 0, %v1379
        %v1381 = vrot.slane %v1376, %v1380
        %v1382 = vlaneseq
        %v1383 = vshrl.u32 %v1382, 7
        %v1384 = vsub.s32 1, %v1383
        %v1385 = vrot.slane %v1376, %v1384
        %v1386 = vlaneseq
        %v1387 = vshrl.u32 %v1386, 7
        %v1388 = vsub.s32 2, %v1387
        %v1389 = vrot.slane %v1376, %v1388
        %v1393 = vmul.f32 %v1364, %v1381
        %v1394 = vmul.f32 %v1365, %v1385
        %v1395 = vmul.f32 %v1366, %v1389
        %v1396 = vmul.f32 %v1367, %v1381
        %v1397 = vmul.f32 %v1368, %v1385
        %v1398 = vmul.f32 %v1369, %v1389
        %v1399 = vmul.f32 %v1370, %v1381
        %v1400 = vmul.f32 %v1371, %v1385
        %v1401 = vmul.f32 %v1372, %v1389
        %v1402 = vmul.f32 %v1373, %v1381
        %v1403 = vmul.f32 %v1374, %v1385
        %v1404 = vmul.f32 %v1375, %v1389
        %v1405 = vpack.c.bf16 %v1396, %v1393
        %v1406 = vpack.c.bf16 %v1397, %v1394
        %v1407 = vpack.c.bf16 %v1398, %v1395
        %v1408 = vpack.c.bf16 %v1402, %v1399
        %v1409 = vpack.c.bf16 %v1403, %v1400
        %v1410 = vpack.c.bf16 %v1404, %v1401
        %vm1411 = vcmask 150528
        %1412 = vst.msk [vmem:[#allocation3] sm:$0xf] %vm1411, 0
        %1413 = vst.msk [vmem:[#allocation3 + $0xc] sm:$0xf] %vm1411, 0
        %1414 = vst.msk [vmem:[#allocation3 + $0x18] sm:$0xf] %vm1411, 0
        %1415 = vst.msk [vmem:[#allocation3 + $0x24] sm:$0xf] %vm1411, 0
        %v1422 = vunpack.c.l.b16 %v1405
        %v1423 = vunpack.c.l.b16 %v1406
        %v1424 = vunpack.c.l.b16 %v1407
        %v1425 = vunpack.c.h.b16 %v1405
        %v1426 = vunpack.c.h.b16 %v1406
        %v1427 = vunpack.c.h.b16 %v1407
        %v1428 = vunpack.c.l.b16 %v1408
        %v1429 = vunpack.c.l.b16 %v1409
        %v1430 = vunpack.c.l.b16 %v1410
        %v1431 = vunpack.c.h.b16 %v1408
        %v1432 = vunpack.c.h.b16 %v1409
        %v1433 = vunpack.c.h.b16 %v1410
        %v1434 = vpack.c.b16 %v1423, %v1422
        %v1435 = vpack.c.b16 %v1424, %v1424
        %v1436 = vpack.c.b16 %v1426, %v1425
        %v1437 = vpack.c.b16 %v1427, %v1427
        %v1438 = vpack.c.b16 %v1429, %v1428
        %v1439 = vpack.c.b16 %v1430, %v1430
        %v1440 = vpack.c.b16 %v1432, %v1431
        %v1441 = vpack.c.b16 %v1433, %v1433
        %1442 = vrot.lane.b32.xlu0 %v1434, 19
        %v1443 = vpop.permute.xlu0 %1442
        %1444 = vrot.lane.b32.xlu0 %v1435, 19
        %v1445 = vpop.permute.xlu0 %1444
        %1446 = vrot.lane.b32.xlu0 %v1436, 19
        %v1447 = vpop.permute.xlu0 %1446
        %1448 = vrot.lane.b32.xlu0 %v1437, 19
        %v1449 = vpop.permute.xlu0 %1448
        %1450 = vrot.lane.b32.xlu0 %v1438, 19
        %v1451 = vpop.permute.xlu0 %1450
        %1452 = vrot.lane.b32.xlu0 %v1439, 19
        %v1453 = vpop.permute.xlu0 %1452
        %1454 = vrot.lane.b32.xlu0 %v1440, 19
        %v1455 = vpop.permute.xlu0 %1454
        %1456 = vrot.lane.b32.xlu0 %v1441, 19
        %v1457 = vpop.permute.xlu0 %1456
        %v1458 = vrot.slane %v1443, 4
        %v1459 = vrot.slane %v1447, 4
        %v1460 = vrot.slane %v1451, 4
        %v1461 = vrot.slane %v1455, 4
        %vm1462 = vcmask 154624
        %v1463 = vsel %vm1462, %v1458, %v1443
        %v1464 = vsel %vm1462, %v1458, %v1445
        %v1465 = vsel %vm1462, %v1459, %v1447
        %v1466 = vsel %vm1462, %v1459, %v1449
        %v1467 = vsel %vm1462, %v1460, %v1451
        %v1468 = vsel %vm1462, %v1460, %v1453
        %v1469 = vsel %vm1462, %v1461, %v1455
        %v1470 = vsel %vm1462, %v1461, %v1457
        %vm1479 = vcmask 1043608
        %vm1480 = vcmask 1047556
        %vm1481 = vmor %vm1480, %vm1479
        %1482 = vst.msk [vmem:[#allocation3] sm:$0xff] %vm1481, %v1463
        %vm1483 = vcmask 412672
        %1484 = vst.msk [vmem:[#allocation3 + $0x8] sm:$0xf] %vm1483, %v1464
        %1485 = vst.msk [vmem:[#allocation3 + $0xc] sm:$0xff] %vm1481, %v1465
        %1486 = vst.msk [vmem:[#allocation3 + $0x14] sm:$0xf] %vm1483, %v1466
        %1487 = vst.msk [vmem:[#allocation3 + $0x18] sm:$0xff] %vm1481, %v1467
        %1488 = vst.msk [vmem:[#allocation3 + $0x20] sm:$0xf] %vm1483, %v1468
        %1489 = vst.msk [vmem:[#allocation3 + $0x24] sm:$0xff] %vm1481, %v1469
        %1490 = vst.msk [vmem:[#allocation3 + $0x2c] sm:$0xf] %vm1483, %v1470
        %vm1491 = vcmask 568728
        %1492 = vst.msk [vmem:[#allocation3 + $0x8] sm:$0xf] %vm1491, 0
        %1493 = vst.msk [vmem:[#allocation3 + $0x14] sm:$0xf] %vm1491, 0
        %1494 = vst.msk [vmem:[#allocation3 + $0x20] sm:$0xf] %vm1491, 0
        %1495 = vst.msk [vmem:[#allocation3 + $0x2c] sm:$0xf] %vm1491, 0
        %v1496 = vld [vmem:[#allocation3] sm:$0xff]
        %v1497 = vld [vmem:[#allocation3 + $0x8] sm:$0xf]
        %v1498 = vld [vmem:[#allocation3 + $0xc] sm:$0xff]
        %v1499 = vld [vmem:[#allocation3 + $0x14] sm:$0xf]
        %v1500 = vld [vmem:[#allocation3 + $0x18] sm:$0xff]
        %v1501 = vld [vmem:[#allocation3 + $0x20] sm:$0xf]
        %v1502 = vld [vmem:[#allocation3 + $0x24] sm:$0xff]
        %v1503 = vld [vmem:[#allocation3 + $0x2c] sm:$0xf]
        %1504 = vst [vmem:[#allocation4] sm:$0xff] %v1496
        %1505 = vst.msk [vmem:[#allocation4 + $0x8] sm:$0xf] %vm322, %v1497
        %1506 = vst [vmem:[#allocation4 + $0xc] sm:$0xff] %v1498
        %1507 = vst.msk [vmem:[#allocation4 + $0x14] sm:$0xf] %vm322, %v1499
        %1508 = vst [vmem:[#allocation4 + $0x18] sm:$0xff] %v1500
        %1509 = vst.msk [vmem:[#allocation4 + $0x20] sm:$0xf] %vm322, %v1501
        %1510 = vst [vmem:[#allocation4 + $0x24] sm:$0xff] %v1502
        %1511 = vst.msk [vmem:[#allocation4 + $0x2c] sm:$0xf] %vm322, %v1503
        %1520 = vrot.lane.b32.xlu0 %v1496, 127
        %v1521 = vpop.permute.xlu0 %1520
        %1522 = vrot.lane.b32.xlu0 %v1497, 127
        %v1523 = vpop.permute.xlu0 %1522
        %1524 = vrot.lane.b32.xlu0 %v1498, 127
        %v1525 = vpop.permute.xlu0 %1524
        %1526 = vrot.lane.b32.xlu0 %v1499, 127
        %v1527 = vpop.permute.xlu0 %1526
        %1528 = vrot.lane.b32.xlu0 %v1500, 127
        %v1529 = vpop.permute.xlu0 %1528
        %1530 = vrot.lane.b32.xlu0 %v1501, 127
        %v1531 = vpop.permute.xlu0 %1530
        %1532 = vrot.lane.b32.xlu0 %v1502, 127
        %v1533 = vpop.permute.xlu0 %1532
        %1534 = vrot.lane.b32.xlu0 %v1503, 127
        %v1535 = vpop.permute.xlu0 %1534
        %v1536 = vrot.slane %v1521, 4
        %v1537 = vrot.slane %v1523, 4
        %v1538 = vrot.slane %v1525, 4
        %v1539 = vrot.slane %v1527, 4
        %v1540 = vrot.slane %v1529, 4
        %v1541 = vrot.slane %v1531, 4
        %v1542 = vrot.slane %v1533, 4
        %v1543 = vrot.slane %v1535, 4
        %v1544 = vsel %vm362, %v1536, %v1537
        %v1545 = vsel %vm364, %v1521, %v1544
        %v1546 = vsel %vm362, %v1538, %v1539
        %v1547 = vsel %vm364, %v1525, %v1546
        %v1548 = vsel %vm362, %v1540, %v1541
        %v1549 = vsel %vm364, %v1529, %v1548
        %v1550 = vsel %vm362, %v1542, %v1543
        %v1551 = vsel %vm364, %v1533, %v1550
        %1560 = vst [vmem:[#allocation4 + $0x30] sm:$0xff] %v1545
        %1561 = vst.msk [vmem:[#allocation4 + $0x38] sm:$0xf] %vm322, %v1523
        %1562 = vst [vmem:[#allocation4 + $0x3c] sm:$0xff] %v1547
        %1563 = vst.msk [vmem:[#allocation4 + $0x44] sm:$0xf] %vm322, %v1527
        %1564 = vst [vmem:[#allocation4 + $0x48] sm:$0xff] %v1549
        %1565 = vst.msk [vmem:[#allocation4 + $0x50] sm:$0xf] %vm322, %v1531
        %1566 = vst [vmem:[#allocation4 + $0x54] sm:$0xff] %v1551
        %1567 = vst.msk [vmem:[#allocation4 + $0x5c] sm:$0xf] %vm322, %v1535
        %1568 = vrot.lane.b32.xlu0 %v1496, 126
        %v1569 = vpop.permute.xlu0 %1568
        %1570 = vrot.lane.b32.xlu0 %v1497, 126
        %v1571 = vpop.permute.xlu0 %1570
        %1572 = vrot.lane.b32.xlu0 %v1498, 126
        %v1573 = vpop.permute.xlu0 %1572
        %1574 = vrot.lane.b32.xlu0 %v1499, 126
        %v1575 = vpop.permute.xlu0 %1574
        %1576 = vrot.lane.b32.xlu0 %v1500, 126
        %v1577 = vpop.permute.xlu0 %1576
        %1578 = vrot.lane.b32.xlu0 %v1501, 126
        %v1579 = vpop.permute.xlu0 %1578
        %1580 = vrot.lane.b32.xlu0 %v1502, 126
        %v1581 = vpop.permute.xlu0 %1580
        %1582 = vrot.lane.b32.xlu0 %v1503, 126
        %v1583 = vpop.permute.xlu0 %1582
        %v1584 = vrot.slane %v1569, 4
        %v1585 = vrot.slane %v1571, 4
        %v1586 = vrot.slane %v1573, 4
        %v1587 = vrot.slane %v1575, 4
        %v1588 = vrot.slane %v1577, 4
        %v1589 = vrot.slane %v1579, 4
        %v1590 = vrot.slane %v1581, 4
        %v1591 = vrot.slane %v1583, 4
        %v1592 = vsel %vm362, %v1584, %v1585
        %v1593 = vsel %vm413, %v1569, %v1592
        %v1594 = vsel %vm362, %v1586, %v1587
        %v1595 = vsel %vm413, %v1573, %v1594
        %v1596 = vsel %vm362, %v1588, %v1589
        %v1597 = vsel %vm413, %v1577, %v1596
        %v1598 = vsel %vm362, %v1590, %v1591
        %v1599 = vsel %vm413, %v1581, %v1598
        %1608 = vst [vmem:[#allocation4 + $0x60] sm:$0xff] %v1593
        %1609 = vst.msk [vmem:[#allocation4 + $0x68] sm:$0xf] %vm322, %v1571
        %1610 = vst [vmem:[#allocation4 + $0x6c] sm:$0xff] %v1595
        %1611 = vst.msk [vmem:[#allocation4 + $0x74] sm:$0xf] %vm322, %v1575
        %1612 = vst [vmem:[#allocation4 + $0x78] sm:$0xff] %v1597
        %1613 = vst.msk [vmem:[#allocation4 + $0x80] sm:$0xf] %vm322, %v1579
        %1614 = vst [vmem:[#allocation4 + $0x84] sm:$0xff] %v1599
        %1615 = vst.msk [vmem:[#allocation4 + $0x8c] sm:$0xf] %vm322, %v1583
        %1616 = vrot.lane.b32.xlu0 %v1496, 110
        %v1617 = vpop.permute.xlu0 %1616
        %1618 = vrot.lane.b32.xlu0 %v1497, 110
        %v1619 = vpop.permute.xlu0 %1618
        %1620 = vrot.lane.b32.xlu0 %v1498, 110
        %v1621 = vpop.permute.xlu0 %1620
        %1622 = vrot.lane.b32.xlu0 %v1499, 110
        %v1623 = vpop.permute.xlu0 %1622
        %1624 = vrot.lane.b32.xlu0 %v1500, 110
        %v1625 = vpop.permute.xlu0 %1624
        %1626 = vrot.lane.b32.xlu0 %v1501, 110
        %v1627 = vpop.permute.xlu0 %1626
        %1628 = vrot.lane.b32.xlu0 %v1502, 110
        %v1629 = vpop.permute.xlu0 %1628
        %1630 = vrot.lane.b32.xlu0 %v1503, 110
        %v1631 = vpop.permute.xlu0 %1630
        %v1632 = vrot.slane %v1617, 4
        %v1633 = vrot.slane %v1619, 4
        %v1634 = vrot.slane %v1621, 4
        %v1635 = vrot.slane %v1623, 4
        %v1636 = vrot.slane %v1625, 4
        %v1637 = vrot.slane %v1627, 4
        %v1638 = vrot.slane %v1629, 4
        %v1639 = vrot.slane %v1631, 4
        %v1640 = vsel %vm362, %v1632, %v1633
        %v1641 = vsel %vm462, %v1617, %v1640
        %v1642 = vsel %vm362, %v1634, %v1635
        %v1643 = vsel %vm462, %v1621, %v1642
        %v1644 = vsel %vm362, %v1636, %v1637
        %v1645 = vsel %vm462, %v1625, %v1644
        %v1646 = vsel %vm362, %v1638, %v1639
        %v1647 = vsel %vm462, %v1629, %v1646
        %1656 = vst [vmem:[#allocation4 + $0x90] sm:$0xff] %v1641
        %1657 = vst.msk [vmem:[#allocation4 + $0x98] sm:$0xf] %vm322, %v1619
        %1658 = vst [vmem:[#allocation4 + $0x9c] sm:$0xff] %v1643
        %1659 = vst.msk [vmem:[#allocation4 + $0xa4] sm:$0xf] %vm322, %v1623
        %1660 = vst [vmem:[#allocation4 + $0xa8] sm:$0xff] %v1645
        %1661 = vst.msk [vmem:[#allocation4 + $0xb0] sm:$0xf] %vm322, %v1627
        %1662 = vst [vmem:[#allocation4 + $0xb4] sm:$0xff] %v1647
        %1663 = vst.msk [vmem:[#allocation4 + $0xbc] sm:$0xf] %vm322, %v1631
        %1664 = vrot.lane.b32.xlu0 %v1496, 109
        %v1665 = vpop.permute.xlu0 %1664
        %1666 = vrot.lane.b32.xlu0 %v1497, 109
        %v1667 = vpop.permute.xlu0 %1666
        %1668 = vrot.lane.b32.xlu0 %v1498, 109
        %v1669 = vpop.permute.xlu0 %1668
        %1670 = vrot.lane.b32.xlu0 %v1499, 109
        %v1671 = vpop.permute.xlu0 %1670
        %1672 = vrot.lane.b32.xlu0 %v1500, 109
        %v1673 = vpop.permute.xlu0 %1672
        %1674 = vrot.lane.b32.xlu0 %v1501, 109
        %v1675 = vpop.permute.xlu0 %1674
        %1676 = vrot.lane.b32.xlu0 %v1502, 109
        %v1677 = vpop.permute.xlu0 %1676
        %1678 = vrot.lane.b32.xlu0 %v1503, 109
        %v1679 = vpop.permute.xlu0 %1678
        %v1680 = vrot.slane %v1665, 4
        %v1681 = vrot.slane %v1667, 4
        %v1682 = vrot.slane %v1669, 4
        %v1683 = vrot.slane %v1671, 4
        %v1684 = vrot.slane %v1673, 4
        %v1685 = vrot.slane %v1675, 4
        %v1686 = vrot.slane %v1677, 4
        %v1687 = vrot.slane %v1679, 4
        %v1688 = vsel %vm362, %v1680, %v1681
        %v1689 = vsel %vm511, %v1665, %v1688
        %v1690 = vsel %vm362, %v1682, %v1683
        %v1691 = vsel %vm511, %v1669, %v1690
        %v1692 = vsel %vm362, %v1684, %v1685
        %v1693 = vsel %vm511, %v1673, %v1692
        %v1694 = vsel %vm362, %v1686, %v1687
        %v1695 = vsel %vm511, %v1677, %v1694
        %1704 = vst [vmem:[#allocation4 + $0xc0] sm:$0xff] %v1689
        %1705 = vst.msk [vmem:[#allocation4 + $0xc8] sm:$0xf] %vm322, %v1667
        %1706 = vst [vmem:[#allocation4 + $0xcc] sm:$0xff] %v1691
        %1707 = vst.msk [vmem:[#allocation4 + $0xd4] sm:$0xf] %vm322, %v1671
        %1708 = vst [vmem:[#allocation4 + $0xd8] sm:$0xff] %v1693
        %1709 = vst.msk [vmem:[#allocation4 + $0xe0] sm:$0xf] %vm322, %v1675
        %1710 = vst [vmem:[#allocation4 + $0xe4] sm:$0xff] %v1695
        %1711 = vst.msk [vmem:[#allocation4 + $0xec] sm:$0xf] %vm322, %v1679
        %1712 = vrot.lane.b32.xlu0 %v1496, 108
        %v1713 = vpop.permute.xlu0 %1712
        %1714 = vrot.lane.b32.xlu0 %v1497, 108
        %v1715 = vpop.permute.xlu0 %1714
        %1716 = vrot.lane.b32.xlu0 %v1498, 108
        %v1717 = vpop.permute.xlu0 %1716
        %1718 = vrot.lane.b32.xlu0 %v1499, 108
        %v1719 = vpop.permute.xlu0 %1718
        %1720 = vrot.lane.b32.xlu0 %v1500, 108
        %v1721 = vpop.permute.xlu0 %1720
        %1722 = vrot.lane.b32.xlu0 %v1501, 108
        %v1723 = vpop.permute.xlu0 %1722
        %1724 = vrot.lane.b32.xlu0 %v1502, 108
        %v1725 = vpop.permute.xlu0 %1724
        %1726 = vrot.lane.b32.xlu0 %v1503, 108
        %v1727 = vpop.permute.xlu0 %1726
        %v1728 = vrot.slane %v1713, 4
        %v1729 = vrot.slane %v1715, 4
        %v1730 = vrot.slane %v1717, 4
        %v1731 = vrot.slane %v1719, 4
        %v1732 = vrot.slane %v1721, 4
        %v1733 = vrot.slane %v1723, 4
        %v1734 = vrot.slane %v1725, 4
        %v1735 = vrot.slane %v1727, 4
        %v1736 = vsel %vm362, %v1728, %v1729
        %v1737 = vsel %vm560, %v1713, %v1736
        %v1738 = vsel %vm362, %v1730, %v1731
        %v1739 = vsel %vm560, %v1717, %v1738
        %v1740 = vsel %vm362, %v1732, %v1733
        %v1741 = vsel %vm560, %v1721, %v1740
        %v1742 = vsel %vm362, %v1734, %v1735
        %v1743 = vsel %vm560, %v1725, %v1742
        %1752 = vst [vmem:[#allocation4 + $0xf0] sm:$0xff] %v1737
        %1753 = vst.msk [vmem:[#allocation4 + $0xf8] sm:$0xf] %vm322, %v1715
        %1754 = vst [vmem:[#allocation4 + $0xfc] sm:$0xff] %v1739
        %1755 = vst.msk [vmem:[#allocation4 + $0x104] sm:$0xf] %vm322, %v1719
        %1756 = vst [vmem:[#allocation4 + $0x108] sm:$0xff] %v1741
        %1757 = vst.msk [vmem:[#allocation4 + $0x110] sm:$0xf] %vm322, %v1723
        %1758 = vst [vmem:[#allocation4 + $0x114] sm:$0xff] %v1743
        %1759 = vst.msk [vmem:[#allocation4 + $0x11c] sm:$0xf] %vm322, %v1727
        %1760 = vrot.lane.b32.xlu0 %v1496, 92
        %v1761 = vpop.permute.xlu0 %1760
        %1762 = vrot.lane.b32.xlu0 %v1497, 92
        %v1763 = vpop.permute.xlu0 %1762
        %1764 = vrot.lane.b32.xlu0 %v1498, 92
        %v1765 = vpop.permute.xlu0 %1764
        %1766 = vrot.lane.b32.xlu0 %v1499, 92
        %v1767 = vpop.permute.xlu0 %1766
        %1768 = vrot.lane.b32.xlu0 %v1500, 92
        %v1769 = vpop.permute.xlu0 %1768
        %1770 = vrot.lane.b32.xlu0 %v1501, 92
        %v1771 = vpop.permute.xlu0 %1770
        %1772 = vrot.lane.b32.xlu0 %v1502, 92
        %v1773 = vpop.permute.xlu0 %1772
        %1774 = vrot.lane.b32.xlu0 %v1503, 92
        %v1775 = vpop.permute.xlu0 %1774
        %v1776 = vrot.slane %v1761, 4
        %v1777 = vrot.slane %v1763, 4
        %v1778 = vrot.slane %v1765, 4
        %v1779 = vrot.slane %v1767, 4
        %v1780 = vrot.slane %v1769, 4
        %v1781 = vrot.slane %v1771, 4
        %v1782 = vrot.slane %v1773, 4
        %v1783 = vrot.slane %v1775, 4
        %v1784 = vsel %vm362, %v1776, %v1777
        %v1785 = vsel %vm609, %v1761, %v1784
        %v1786 = vsel %vm362, %v1778, %v1779
        %v1787 = vsel %vm609, %v1765, %v1786
        %v1788 = vsel %vm362, %v1780, %v1781
        %v1789 = vsel %vm609, %v1769, %v1788
        %v1790 = vsel %vm362, %v1782, %v1783
        %v1791 = vsel %vm609, %v1773, %v1790
        %1800 = vst [vmem:[#allocation4 + $0x120] sm:$0xff] %v1785
        %1801 = vst.msk [vmem:[#allocation4 + $0x128] sm:$0xf] %vm322, %v1763
        %1802 = vst [vmem:[#allocation4 + $0x12c] sm:$0xff] %v1787
        %1803 = vst.msk [vmem:[#allocation4 + $0x134] sm:$0xf] %vm322, %v1767
        %1804 = vst [vmem:[#allocation4 + $0x138] sm:$0xff] %v1789
        %1805 = vst.msk [vmem:[#allocation4 + $0x140] sm:$0xf] %vm322, %v1771
        %1806 = vst [vmem:[#allocation4 + $0x144] sm:$0xff] %v1791
        %1807 = vst.msk [vmem:[#allocation4 + $0x14c] sm:$0xf] %vm322, %v1775
        %1808 = vrot.lane.b32.xlu0 %v1496, 91
        %v1809 = vpop.permute.xlu0 %1808
        %1810 = vrot.lane.b32.xlu0 %v1497, 91
        %v1811 = vpop.permute.xlu0 %1810
        %1812 = vrot.lane.b32.xlu0 %v1498, 91
        %v1813 = vpop.permute.xlu0 %1812
        %1814 = vrot.lane.b32.xlu0 %v1499, 91
        %v1815 = vpop.permute.xlu0 %1814
        %1816 = vrot.lane.b32.xlu0 %v1500, 91
        %v1817 = vpop.permute.xlu0 %1816
        %1818 = vrot.lane.b32.xlu0 %v1501, 91
        %v1819 = vpop.permute.xlu0 %1818
        %1820 = vrot.lane.b32.xlu0 %v1502, 91
        %v1821 = vpop.permute.xlu0 %1820
        %1822 = vrot.lane.b32.xlu0 %v1503, 91
        %v1823 = vpop.permute.xlu0 %1822
        %v1824 = vrot.slane %v1809, 4
        %v1825 = vrot.slane %v1811, 4
        %v1826 = vrot.slane %v1813, 4
        %v1827 = vrot.slane %v1815, 4
        %v1828 = vrot.slane %v1817, 4
        %v1829 = vrot.slane %v1819, 4
        %v1830 = vrot.slane %v1821, 4
        %v1831 = vrot.slane %v1823, 4
        %v1832 = vsel %vm362, %v1824, %v1825
        %v1833 = vsel %vm658, %v1809, %v1832
        %v1834 = vsel %vm362, %v1826, %v1827
        %v1835 = vsel %vm658, %v1813, %v1834
        %v1836 = vsel %vm362, %v1828, %v1829
        %v1837 = vsel %vm658, %v1817, %v1836
        %v1838 = vsel %vm362, %v1830, %v1831
        %v1839 = vsel %vm658, %v1821, %v1838
        %1848 = vst [vmem:[#allocation4 + $0x150] sm:$0xff] %v1833
        %1849 = vst.msk [vmem:[#allocation4 + $0x158] sm:$0xf] %vm322, %v1811
        %1850 = vst [vmem:[#allocation4 + $0x15c] sm:$0xff] %v1835
        %1851 = vst.msk [vmem:[#allocation4 + $0x164] sm:$0xf] %vm322, %v1815
        %1852 = vst [vmem:[#allocation4 + $0x168] sm:$0xff] %v1837
        %1853 = vst.msk [vmem:[#allocation4 + $0x170] sm:$0xf] %vm322, %v1819
        %1854 = vst [vmem:[#allocation4 + $0x174] sm:$0xff] %v1839
        %1855 = vst.msk [vmem:[#allocation4 + $0x17c] sm:$0xf] %vm322, %v1823
        %1856 = vrot.lane.b32.xlu0 %v1496, 90
        %v1857 = vpop.permute.xlu0 %1856
        %1858 = vrot.lane.b32.xlu0 %v1497, 90
        %v1859 = vpop.permute.xlu0 %1858
        %1860 = vrot.lane.b32.xlu0 %v1498, 90
        %v1861 = vpop.permute.xlu0 %1860
        %1862 = vrot.lane.b32.xlu0 %v1499, 90
        %v1863 = vpop.permute.xlu0 %1862
        %1864 = vrot.lane.b32.xlu0 %v1500, 90
        %v1865 = vpop.permute.xlu0 %1864
        %1866 = vrot.lane.b32.xlu0 %v1501, 90
        %v1867 = vpop.permute.xlu0 %1866
        %1868 = vrot.lane.b32.xlu0 %v1502, 90
        %v1869 = vpop.permute.xlu0 %1868
        %1870 = vrot.lane.b32.xlu0 %v1503, 90
        %v1871 = vpop.permute.xlu0 %1870
        %v1872 = vrot.slane %v1857, 4
        %v1873 = vrot.slane %v1859, 4
        %v1874 = vrot.slane %v1861, 4
        %v1875 = vrot.slane %v1863, 4
        %v1876 = vrot.slane %v1865, 4
        %v1877 = vrot.slane %v1867, 4
        %v1878 = vrot.slane %v1869, 4
        %v1879 = vrot.slane %v1871, 4
        %v1880 = vsel %vm362, %v1872, %v1873
        %v1881 = vsel %vm707, %v1857, %v1880
        %v1882 = vsel %vm362, %v1874, %v1875
        %v1883 = vsel %vm707, %v1861, %v1882
        %v1884 = vsel %vm362, %v1876, %v1877
        %v1885 = vsel %vm707, %v1865, %v1884
        %v1886 = vsel %vm362, %v1878, %v1879
        %v1887 = vsel %vm707, %v1869, %v1886
        %1896 = vst [vmem:[#allocation4 + $0x180] sm:$0xff] %v1881
        %1897 = vst.msk [vmem:[#allocation4 + $0x188] sm:$0xf] %vm322, %v1859
        %1898 = vst [vmem:[#allocation4 + $0x18c] sm:$0xff] %v1883
        %1899 = vst.msk [vmem:[#allocation4 + $0x194] sm:$0xf] %vm322, %v1863
        %1900 = vst [vmem:[#allocation4 + $0x198] sm:$0xff] %v1885
        %1901 = vst.msk [vmem:[#allocation4 + $0x1a0] sm:$0xf] %vm322, %v1867
        %1902 = vst [vmem:[#allocation4 + $0x1a4] sm:$0xff] %v1887
        %1903 = vst.msk [vmem:[#allocation4 + $0x1ac] sm:$0xf] %vm322, %v1871
        %v1904 = vld [vmem:[#allocation8] sm:$0xff]
        %v1905 = vld [vmem:[#allocation8 + $0x8] sm:$0xf]
        %v1906 = vld [vmem:[#allocation8 + $0xc] sm:$0xff]
        %v1907 = vld [vmem:[#allocation8 + $0x14] sm:$0xf]
        %v1908 = vld [vmem:[#allocation8 + $0x18] sm:$0xff]
        %v1909 = vld [vmem:[#allocation8 + $0x20] sm:$0xf]
        %v1910 = vld [vmem:[#allocation8 + $0x24] sm:$0xff]
        %v1911 = vld [vmem:[#allocation8 + $0x2c] sm:$0xf]
        %v1912 = vld [vmem:[#allocation4] sm:$0xff]
        %v1913 = vld [vmem:[#allocation4 + $0x8] sm:$0xf]
        %v1914 = vld [vmem:[#allocation4 + $0xc] sm:$0xff]
        %v1915 = vld [vmem:[#allocation4 + $0x14] sm:$0xf]
        %v1916 = vld [vmem:[#allocation4 + $0x18] sm:$0xff]
        %v1917 = vld [vmem:[#allocation4 + $0x20] sm:$0xf]
        %v1918 = vld [vmem:[#allocation4 + $0x24] sm:$0xff]
        %v1919 = vld [vmem:[#allocation4 + $0x2c] sm:$0xf]
        %v1920 = vld [vmem:[#allocation4 + $0x30] sm:$0xff]
        %v1921 = vld [vmem:[#allocation4 + $0x38] sm:$0xf]
        %v1922 = vld [vmem:[#allocation4 + $0x3c] sm:$0xff]
        %v1923 = vld [vmem:[#allocation4 + $0x44] sm:$0xf]
        %v1924 = vld [vmem:[#allocation4 + $0x48] sm:$0xff]
        %v1925 = vld [vmem:[#allocation4 + $0x50] sm:$0xf]
        %v1926 = vld [vmem:[#allocation4 + $0x54] sm:$0xff]
        %v1927 = vld [vmem:[#allocation4 + $0x5c] sm:$0xf]
        %v1928 = vld [vmem:[#allocation4 + $0x60] sm:$0xff]
        %v1929 = vld [vmem:[#allocation4 + $0x68] sm:$0xf]
        %v1930 = vld [vmem:[#allocation4 + $0x6c] sm:$0xff]
        %v1931 = vld [vmem:[#allocation4 + $0x74] sm:$0xf]
        %v1932 = vld [vmem:[#allocation4 + $0x78] sm:$0xff]
        %v1933 = vld [vmem:[#allocation4 + $0x80] sm:$0xf]
        %v1934 = vld [vmem:[#allocation4 + $0x84] sm:$0xff]
        %v1935 = vld [vmem:[#allocation4 + $0x8c] sm:$0xf]
        %v1936 = vld [vmem:[#allocation4 + $0x90] sm:$0xff]
        %v1937 = vld [vmem:[#allocation4 + $0x98] sm:$0xf]
        %v1938 = vld [vmem:[#allocation4 + $0x9c] sm:$0xff]
        %v1939 = vld [vmem:[#allocation4 + $0xa4] sm:$0xf]
        %v1940 = vld [vmem:[#allocation4 + $0xa8] sm:$0xff]
        %v1941 = vld [vmem:[#allocation4 + $0xb0] sm:$0xf]
        %v1942 = vld [vmem:[#allocation4 + $0xb4] sm:$0xff]
        %v1943 = vld [vmem:[#allocation4 + $0xbc] sm:$0xf]
        %v1944 = vld [vmem:[#allocation4 + $0xc0] sm:$0xff]
        %v1945 = vld [vmem:[#allocation4 + $0xc8] sm:$0xf]
        %v1946 = vld [vmem:[#allocation4 + $0xcc] sm:$0xff]
        %v1947 = vld [vmem:[#allocation4 + $0xd4] sm:$0xf]
        %v1948 = vld [vmem:[#allocation4 + $0xd8] sm:$0xff]
        %v1949 = vld [vmem:[#allocation4 + $0xe0] sm:$0xf]
        %v1950 = vld [vmem:[#allocation4 + $0xe4] sm:$0xff]
        %v1951 = vld [vmem:[#allocation4 + $0xec] sm:$0xf]
        %v1952 = vld [vmem:[#allocation4 + $0xf0] sm:$0xff]
        %v1953 = vld [vmem:[#allocation4 + $0xf8] sm:$0xf]
        %v1954 = vld [vmem:[#allocation4 + $0xfc] sm:$0xff]
        %v1955 = vld [vmem:[#allocation4 + $0x104] sm:$0xf]
        %v1956 = vld [vmem:[#allocation4 + $0x108] sm:$0xff]
        %v1957 = vld [vmem:[#allocation4 + $0x110] sm:$0xf]
        %v1958 = vld [vmem:[#allocation4 + $0x114] sm:$0xff]
        %v1959 = vld [vmem:[#allocation4 + $0x11c] sm:$0xf]
        %v1960 = vld [vmem:[#allocation4 + $0x120] sm:$0xff]
        %v1961 = vld [vmem:[#allocation4 + $0x128] sm:$0xf]
        %v1962 = vld [vmem:[#allocation4 + $0x12c] sm:$0xff]
        %v1963 = vld [vmem:[#allocation4 + $0x134] sm:$0xf]
        %v1964 = vld [vmem:[#allocation4 + $0x138] sm:$0xff]
        %v1965 = vld [vmem:[#allocation4 + $0x140] sm:$0xf]
        %v1966 = vld [vmem:[#allocation4 + $0x144] sm:$0xff]
        %v1967 = vld [vmem:[#allocation4 + $0x14c] sm:$0xf]
        %v1968 = vld [vmem:[#allocation4 + $0x150] sm:$0xff]
        %v1969 = vld [vmem:[#allocation4 + $0x158] sm:$0xf]
        %v1970 = vld [vmem:[#allocation4 + $0x15c] sm:$0xff]
        %v1971 = vld [vmem:[#allocation4 + $0x164] sm:$0xf]
        %v1972 = vld [vmem:[#allocation4 + $0x168] sm:$0xff]
        %v1973 = vld [vmem:[#allocation4 + $0x170] sm:$0xf]
        %v1974 = vld [vmem:[#allocation4 + $0x174] sm:$0xff]
        %v1975 = vld [vmem:[#allocation4 + $0x17c] sm:$0xf]
        %v1976 = vld [vmem:[#allocation4 + $0x180] sm:$0xff]
        %v1977 = vld [vmem:[#allocation4 + $0x188] sm:$0xf]
        %v1978 = vld [vmem:[#allocation4 + $0x18c] sm:$0xff]
        %v1979 = vld [vmem:[#allocation4 + $0x194] sm:$0xf]
        %v1980 = vld [vmem:[#allocation4 + $0x198] sm:$0xff]
        %v1981 = vld [vmem:[#allocation4 + $0x1a0] sm:$0xf]
        %v1982 = vld [vmem:[#allocation4 + $0x1a4] sm:$0xff]
        %v1983 = vld [vmem:[#allocation4 + $0x1ac] sm:$0xf]
        %v1984 = vld [vmem:[%s5] sm:$0xf]
        %v1985 = vld [vmem:[%s5 + $0x4] sm:$0xf]
        %v1986 = vld [vmem:[%s5 + $0x8] sm:$0xf]
        %v1987 = vld [vmem:[%s5 + $0xc] sm:$0xf]
        %v1988 = vld [vmem:[#allocation2 + $0xc0] sm:$0xff]
        %v1989 = vld [vmem:[#allocation2 + $0xc8] sm:$0xf]
        %v1990 = vld [vmem:[#allocation2 + $0xcc] sm:$0xff]
        %v1991 = vld [vmem:[#allocation2 + $0xd4] sm:$0xf]
        %v1992 = vld [vmem:[#allocation2 + $0xd8] sm:$0xff]
        %v1993 = vld [vmem:[#allocation2 + $0xe0] sm:$0xf]
        %v1994 = vld [vmem:[#allocation2 + $0xe4] sm:$0xff]
        %v1995 = vld [vmem:[#allocation2 + $0xec] sm:$0xf]
        %v2000 = vunpack.c.l.b16 %v1984
        %v2001 = vunpack.c.l.b16 %v1985
        %v2002 = vunpack.c.l.b16 %v1986
        %v2003 = vunpack.c.l.b16 %v1987
        %v2004 = vpack.c.b16 %v2001, %v2000
        %v2005 = vpack.c.b16 %v2003, %v2002
        %v2014 = vunpack.c.l.b16 %v1988
        %v2015 = vunpack.c.h.b16 %v1988
        %v2016 = vunpack.c.l.b16 %v1989
        %v2017 = vunpack.c.l.b16 %v1990
        %v2018 = vunpack.c.h.b16 %v1990
        %v2019 = vunpack.c.l.b16 %v1991
        %v2020 = vunpack.c.l.b16 %v1992
        %v2021 = vunpack.c.h.b16 %v1992
        %v2022 = vunpack.c.l.b16 %v1993
        %v2023 = vunpack.c.l.b16 %v1994
        %v2024 = vunpack.c.h.b16 %v1994
        %v2025 = vunpack.c.l.b16 %v1995
        %v2026 = vpack.c.b16 %v2017, %v2014
        %v2027 = vpack.c.b16 %v2018, %v2015
        %v2028 = vpack.c.b16 %v2019, %v2016
        %v2029 = vpack.c.b16 %v2023, %v2020
        %v2030 = vpack.c.b16 %v2024, %v2021
        %v2031 = vpack.c.b16 %v2025, %v2022
        %v2039 = vsel %vm1153, %v2004, 0
        %v2042 = vsel %vm1153, %v2005, 0
        %2044 = vmatprep.subr.bf16.mxu0 0
        %2045 = vmatpush1.bf16.msra.mxu0 0
        %2046 = vmatprep.subr.bf16.mxu0 0
        %2047 = vmatpush1.bf16.msra.mxu0 0
        %2048 = vmatprep.subr.bf16.mxu0 0
        %2049 = vmatpush1.bf16.msra.mxu0 0
        %2050 = vmatprep.subr.bf16.mxu0 0
        %2051 = vmatpush1.bf16.msra.mxu0 0
        %2052 = vmatprep.subr.bf16.mxu0 0
        %2053 = vmatpush1.bf16.msra.mxu0 0
        %2054 = vmatprep.subr.bf16.mxu0 0
        %2055 = vmatpush1.bf16.msra.mxu0 0
        %2056 = vmatprep.subr.bf16.mxu0 %v2030
        %2057 = vmatpush1.bf16.msra.mxu0 %v2029
        %2058 = vmatprep.subr.bf16.mxu0 %v2027
        %2059 = vmatpush1.bf16.msra.mxu0 %v2026
        %2060 = vmatprep.subr.bf16.mxu0 0
        %2061 = vmatpush2.bf16.msra.mxu0 0
        %2062 = vmatprep.subr.bf16.mxu0 0
        %2063 = vmatpush2.bf16.msra.mxu0 0
        %2064 = vmatprep.subr.bf16.mxu0 0
        %2065 = vmatpush2.bf16.msra.mxu0 0
        %2066 = vmatprep.subr.bf16.mxu0 0
        %2067 = vmatpush2.bf16.msra.mxu0 0
        %2068 = vmatprep.subr.bf16.mxu0 0
        %2069 = vmatpush2.bf16.msra.mxu0 0
        %2070 = vmatprep.subr.bf16.mxu0 0
        %2071 = vmatpush2.bf16.msra.mxu0 0
        %2072 = vmatprep.subr.bf16.mxu0 0
        %2073 = vmatpush2.bf16.msra.mxu0 0
        %2074 = vmatprep.subr.bf16.mxu0 0
        %2075 = vmatpush2.bf16.msra.mxu0 0
        %2076 = vmatprep.mubr.bf16.mxu0 0
        %2077 = vmatmul.mubr.bf16.gmra.mxu0 %v2039
        %v2078 = vpop.f32.mrf.mxu0
        %v2079 = vadd.f32 0.0, %v2078
        %v2080 = vpop.f32.mrf.mxu0
        %v2081 = vadd.f32 0.0, %v2080
        %v2082 = vpop.f32.mrf.mxu0
        %v2083 = vadd.f32 0.0, %v2082
        %v2084 = vpop.f32.mrf.mxu0
        %v2085 = vadd.f32 0.0, %v2084
        %2086 = vmatprep.mubr.bf16.mxu0 0
        %2087 = vmatmul.mubr.bf16.gmra.mxu0 %v2042
        %v2088 = vpop.f32.mrf.mxu0
        %v2089 = vadd.f32 0.0, %v2088
        %v2090 = vpop.f32.mrf.mxu0
        %v2091 = vadd.f32 0.0, %v2090
        %v2092 = vpop.f32.mrf.mxu0
        %v2093 = vadd.f32 0.0, %v2092
        %v2094 = vpop.f32.mrf.mxu0
        %v2095 = vadd.f32 0.0, %v2094
        %2096 = vdwg.mxu0
        %2097 = vmatprep.subr.bf16.mxu0 0
        %2098 = vmatpush1.bf16.msra.mxu0 0
        %2099 = vmatprep.subr.bf16.mxu0 0
        %2100 = vmatpush1.bf16.msra.mxu0 0
        %2101 = vmatprep.subr.bf16.mxu0 0
        %2102 = vmatpush1.bf16.msra.mxu0 0
        %2103 = vmatprep.subr.bf16.mxu0 0
        %2104 = vmatpush1.bf16.msra.mxu0 0
        %2105 = vmatprep.subr.bf16.mxu0 0
        %2106 = vmatpush1.bf16.msra.mxu0 0
        %2107 = vmatprep.subr.bf16.mxu0 0
        %2108 = vmatpush1.bf16.msra.mxu0 0
        %2109 = vmatprep.subr.bf16.mxu0 0
        %2110 = vmatpush1.bf16.msra.mxu0 %v2031
        %2111 = vmatprep.subr.bf16.mxu0 0
        %2112 = vmatpush1.bf16.msra.mxu0 %v2028
        %2113 = vmatprep.subr.bf16.mxu0 0
        %2114 = vmatpush2.bf16.msra.mxu0 0
        %2115 = vmatprep.subr.bf16.mxu0 0
        %2116 = vmatpush2.bf16.msra.mxu0 0
        %2117 = vmatprep.subr.bf16.mxu0 0
        %2118 = vmatpush2.bf16.msra.mxu0 0
        %2119 = vmatprep.subr.bf16.mxu0 0
        %2120 = vmatpush2.bf16.msra.mxu0 0
        %2121 = vmatprep.subr.bf16.mxu0 0
        %2122 = vmatpush2.bf16.msra.mxu0 0
        %2123 = vmatprep.subr.bf16.mxu0 0
        %2124 = vmatpush2.bf16.msra.mxu0 0
        %2125 = vmatprep.subr.bf16.mxu0 0
        %2126 = vmatpush2.bf16.msra.mxu0 0
        %2127 = vmatprep.subr.bf16.mxu0 0
        %2128 = vmatpush2.bf16.msra.mxu0 0
        %2129 = vmatprep.mubr.bf16.mxu0 0
        %2130 = vmatmul.mubr.bf16.gmra.mxu0 %v2039
        %v2131 = vpop.f32.mrf.mxu0
        %v2132 = vadd.f32 0.0, %v2131
        %v2133 = vpop.f32.mrf.mxu0
        %v2134 = vpop.f32.mrf.mxu0
        %v2135 = vadd.f32 0.0, %v2134
        %v2136 = vpop.f32.mrf.mxu0
        %2137 = vmatprep.mubr.bf16.mxu0 0
        %2138 = vmatmul.mubr.bf16.gmra.mxu0 %v2042
        %v2139 = vpop.f32.mrf.mxu0
        %v2140 = vadd.f32 0.0, %v2139
        %v2141 = vpop.f32.mrf.mxu0
        %v2142 = vpop.f32.mrf.mxu0
        %v2143 = vadd.f32 0.0, %v2142
        %v2144 = vpop.f32.mrf.mxu0
        %2145 = vdwg.mxu0
        %v2154 = vunpack.c.l.b16 %v1904
        %v2155 = vunpack.c.h.b16 %v1904
        %v2156 = vunpack.c.l.b16 %v1905
        %v2157 = vunpack.c.l.b16 %v1906
        %v2158 = vunpack.c.h.b16 %v1906
        %v2159 = vunpack.c.l.b16 %v1907
        %v2160 = vunpack.c.l.b16 %v1908
        %v2161 = vunpack.c.h.b16 %v1908
        %v2162 = vunpack.c.l.b16 %v1909
        %v2163 = vunpack.c.l.b16 %v1910
        %v2164 = vunpack.c.h.b16 %v1910
        %v2165 = vunpack.c.l.b16 %v1911
        %v2166 = vpack.c.b16 %v2157, %v2154
        %v2167 = vpack.c.b16 %v2158, %v2155
        %v2168 = vpack.c.b16 %v2159, %v2156
        %v2169 = vpack.c.b16 %v2163, %v2160
        %v2170 = vpack.c.b16 %v2164, %v2161
        %v2171 = vpack.c.b16 %v2165, %v2162
        %v2248 = vunpack.c.l.b16 %v1912
        %v2249 = vunpack.c.h.b16 %v1912
        %v2250 = vunpack.c.l.b16 %v1913
        %v2251 = vunpack.c.l.b16 %v1914
        %v2252 = vunpack.c.h.b16 %v1914
        %v2253 = vunpack.c.l.b16 %v1915
        %v2254 = vunpack.c.l.b16 %v1916
        %v2255 = vunpack.c.h.b16 %v1916
        %v2256 = vunpack.c.l.b16 %v1917
        %v2257 = vunpack.c.l.b16 %v1918
        %v2258 = vunpack.c.h.b16 %v1918
        %v2259 = vunpack.c.l.b16 %v1919
        %v2260 = vunpack.c.l.b16 %v1920
        %v2261 = vunpack.c.h.b16 %v1920
        %v2262 = vunpack.c.l.b16 %v1921
        %v2263 = vunpack.c.l.b16 %v1922
        %v2264 = vunpack.c.h.b16 %v1922
        %v2265 = vunpack.c.l.b16 %v1923
        %v2266 = vunpack.c.l.b16 %v1924
        %v2267 = vunpack.c.h.b16 %v1924
        %v2268 = vunpack.c.l.b16 %v1925
        %v2269 = vunpack.c.l.b16 %v1926
        %v2270 = vunpack.c.h.b16 %v1926
        %v2271 = vunpack.c.l.b16 %v1927
        %v2272 = vunpack.c.l.b16 %v1928
        %v2273 = vunpack.c.h.b16 %v1928
        %v2274 = vunpack.c.l.b16 %v1929
        %v2275 = vunpack.c.l.b16 %v1930
        %v2276 = vunpack.c.h.b16 %v1930
        %v2277 = vunpack.c.l.b16 %v1931
        %v2278 = vunpack.c.l.b16 %v1932
        %v2279 = vunpack.c.h.b16 %v1932
        %v2280 = vunpack.c.l.b16 %v1933
        %v2281 = vunpack.c.l.b16 %v1934
        %v2282 = vunpack.c.h.b16 %v1934
        %v2283 = vunpack.c.l.b16 %v1935
        %v2284 = vunpack.c.l.b16 %v1936
        %v2285 = vunpack.c.h.b16 %v1936
        %v2286 = vunpack.c.l.b16 %v1937
        %v2287 = vunpack.c.l.b16 %v1938
        %v2288 = vunpack.c.h.b16 %v1938
        %v2289 = vunpack.c.l.b16 %v1939
        %v2290 = vunpack.c.l.b16 %v1940
        %v2291 = vunpack.c.h.b16 %v1940
        %v2292 = vunpack.c.l.b16 %v1941
        %v2293 = vunpack.c.l.b16 %v1942
        %v2294 = vunpack.c.h.b16 %v1942
        %v2295 = vunpack.c.l.b16 %v1943
        %v2296 = vunpack.c.l.b16 %v1944
        %v2297 = vunpack.c.h.b16 %v1944
        %v2298 = vunpack.c.l.b16 %v1945
        %v2299 = vunpack.c.l.b16 %v1946
        %v2300 = vunpack.c.h.b16 %v1946
        %v2301 = vunpack.c.l.b16 %v1947
        %v2302 = vunpack.c.l.b16 %v1948
        %v2303 = vunpack.c.h.b16 %v1948
        %v2304 = vunpack.c.l.b16 %v1949
        %v2305 = vunpack.c.l.b16 %v1950
        %v2306 = vunpack.c.h.b16 %v1950
        %v2307 = vunpack.c.l.b16 %v1951
        %v2308 = vunpack.c.l.b16 %v1952
        %v2309 = vunpack.c.h.b16 %v1952
        %v2310 = vunpack.c.l.b16 %v1953
        %v2311 = vunpack.c.l.b16 %v1954
        %v2312 = vunpack.c.h.b16 %v1954
        %v2313 = vunpack.c.l.b16 %v1955
        %v2314 = vunpack.c.l.b16 %v1956
        %v2315 = vunpack.c.h.b16 %v1956
        %v2316 = vunpack.c.l.b16 %v1957
        %v2317 = vunpack.c.l.b16 %v1958
        %v2318 = vunpack.c.h.b16 %v1958
        %v2319 = vunpack.c.l.b16 %v1959
        %v2320 = vunpack.c.l.b16 %v1960
        %v2321 = vunpack.c.h.b16 %v1960
        %v2322 = vunpack.c.l.b16 %v1961
        %v2323 = vunpack.c.l.b16 %v1962
        %v2324 = vunpack.c.h.b16 %v1962
        %v2325 = vunpack.c.l.b16 %v1963
        %v2326 = vunpack.c.l.b16 %v1964
        %v2327 = vunpack.c.h.b16 %v1964
        %v2328 = vunpack.c.l.b16 %v1965
        %v2329 = vunpack.c.l.b16 %v1966
        %v2330 = vunpack.c.h.b16 %v1966
        %v2331 = vunpack.c.l.b16 %v1967
        %v2332 = vunpack.c.l.b16 %v1968
        %v2333 = vunpack.c.h.b16 %v1968
        %v2334 = vunpack.c.l.b16 %v1969
        %v2335 = vunpack.c.l.b16 %v1970
        %v2336 = vunpack.c.h.b16 %v1970
        %v2337 = vunpack.c.l.b16 %v1971
        %v2338 = vunpack.c.l.b16 %v1972
        %v2339 = vunpack.c.h.b16 %v1972
        %v2340 = vunpack.c.l.b16 %v1973
        %v2341 = vunpack.c.l.b16 %v1974
        %v2342 = vunpack.c.h.b16 %v1974
        %v2343 = vunpack.c.l.b16 %v1975
        %v2344 = vunpack.c.l.b16 %v1976
        %v2345 = vunpack.c.h.b16 %v1976
        %v2346 = vunpack.c.l.b16 %v1977
        %v2347 = vunpack.c.l.b16 %v1978
        %v2348 = vunpack.c.h.b16 %v1978
        %v2349 = vunpack.c.l.b16 %v1979
        %v2350 = vunpack.c.l.b16 %v1980
        %v2351 = vunpack.c.h.b16 %v1980
        %v2352 = vunpack.c.l.b16 %v1981
        %v2353 = vunpack.c.l.b16 %v1982
        %v2354 = vunpack.c.h.b16 %v1982
        %v2355 = vunpack.c.l.b16 %v1983
        %v2356 = vpack.c.b16 %v2251, %v2248
        %v2357 = vpack.c.b16 %v2252, %v2249
        %v2358 = vpack.c.b16 %v2253, %v2250
        %v2359 = vpack.c.b16 %v2257, %v2254
        %v2360 = vpack.c.b16 %v2258, %v2255
        %v2361 = vpack.c.b16 %v2259, %v2256
        %v2362 = vpack.c.b16 %v2263, %v2260
        %v2363 = vpack.c.b16 %v2264, %v2261
        %v2364 = vpack.c.b16 %v2265, %v2262
        %v2365 = vpack.c.b16 %v2269, %v2266
        %v2366 = vpack.c.b16 %v2270, %v2267
        %v2367 = vpack.c.b16 %v2271, %v2268
        %v2368 = vpack.c.b16 %v2275, %v2272
        %v2369 = vpack.c.b16 %v2276, %v2273
        %v2370 = vpack.c.b16 %v2277, %v2274
        %v2371 = vpack.c.b16 %v2281, %v2278
        %v2372 = vpack.c.b16 %v2282, %v2279
        %v2373 = vpack.c.b16 %v2283, %v2280
        %v2374 = vpack.c.b16 %v2287, %v2284
        %v2375 = vpack.c.b16 %v2288, %v2285
        %v2376 = vpack.c.b16 %v2289, %v2286
        %v2377 = vpack.c.b16 %v2293, %v2290
        %v2378 = vpack.c.b16 %v2294, %v2291
        %v2379 = vpack.c.b16 %v2295, %v2292
        %v2380 = vpack.c.b16 %v2299, %v2296
        %v2381 = vpack.c.b16 %v2300, %v2297
        %v2382 = vpack.c.b16 %v2301, %v2298
        %v2383 = vpack.c.b16 %v2305, %v2302
        %v2384 = vpack.c.b16 %v2306, %v2303
        %v2385 = vpack.c.b16 %v2307, %v2304
        %v2386 = vpack.c.b16 %v2311, %v2308
        %v2387 = vpack.c.b16 %v2312, %v2309
        %v2388 = vpack.c.b16 %v2313, %v2310
        %v2389 = vpack.c.b16 %v2317, %v2314
        %v2390 = vpack.c.b16 %v2318, %v2315
        %v2391 = vpack.c.b16 %v2319, %v2316
        %v2392 = vpack.c.b16 %v2323, %v2320
        %v2393 = vpack.c.b16 %v2324, %v2321
        %v2394 = vpack.c.b16 %v2325, %v2322
        %v2395 = vpack.c.b16 %v2329, %v2326
        %v2396 = vpack.c.b16 %v2330, %v2327
        %v2397 = vpack.c.b16 %v2331, %v2328
        %v2398 = vpack.c.b16 %v2335, %v2332
        %v2399 = vpack.c.b16 %v2336, %v2333
        %v2400 = vpack.c.b16 %v2337, %v2334
        %v2401 = vpack.c.b16 %v2341, %v2338
        %v2402 = vpack.c.b16 %v2342, %v2339
        %v2403 = vpack.c.b16 %v2343, %v2340
        %v2404 = vpack.c.b16 %v2347, %v2344
        %v2405 = vpack.c.b16 %v2348, %v2345
        %v2406 = vpack.c.b16 %v2349, %v2346
        %v2407 = vpack.c.b16 %v2353, %v2350
        %v2408 = vpack.c.b16 %v2354, %v2351
        %v2409 = vpack.c.b16 %v2355, %v2352
        %v2465 = vsel %vm1153, %v2168, 0
        %v2468 = vsel %vm1153, %v2171, 0
        %2470 = vmatprep.subr.bf16.mxu0 %v2378
        %2471 = vmatpush1.bf16.msra.mxu0 %v2377
        %2472 = vmatprep.subr.bf16.mxu0 %v2375
        %2473 = vmatpush1.bf16.msra.mxu0 %v2374
        %2474 = vmatprep.subr.bf16.mxu0 %v2372
        %2475 = vmatpush1.bf16.msra.mxu0 %v2371
        %2476 = vmatprep.subr.bf16.mxu0 %v2369
        %2477 = vmatpush1.bf16.msra.mxu0 %v2368
        %2478 = vmatprep.subr.bf16.mxu0 %v2366
        %2479 = vmatpush1.bf16.msra.mxu0 %v2365
        %2480 = vmatprep.subr.bf16.mxu0 %v2363
        %2481 = vmatpush1.bf16.msra.mxu0 %v2362
        %2482 = vmatprep.subr.bf16.mxu0 %v2360
        %2483 = vmatpush1.bf16.msra.mxu0 %v2359
        %2484 = vmatprep.subr.bf16.mxu0 %v2357
        %2485 = vmatpush1.bf16.msra.mxu0 %v2356
        %2486 = vmatprep.subr.bf16.mxu0 %v2402
        %2487 = vmatpush2.bf16.msra.mxu0 %v2401
        %2488 = vmatprep.subr.bf16.mxu0 %v2399
        %2489 = vmatpush2.bf16.msra.mxu0 %v2398
        %2490 = vmatprep.subr.bf16.mxu0 %v2396
        %2491 = vmatpush2.bf16.msra.mxu0 %v2395
        %2492 = vmatprep.subr.bf16.mxu0 %v2393
        %2493 = vmatpush2.bf16.msra.mxu0 %v2392
        %2494 = vmatprep.subr.bf16.mxu0 %v2390
        %2495 = vmatpush2.bf16.msra.mxu0 %v2389
        %2496 = vmatprep.subr.bf16.mxu0 %v2387
        %2497 = vmatpush2.bf16.msra.mxu0 %v2386
        %2498 = vmatprep.subr.bf16.mxu0 %v2384
        %2499 = vmatpush2.bf16.msra.mxu0 %v2383
        %2500 = vmatprep.subr.bf16.mxu0 %v2381
        %2501 = vmatpush2.bf16.msra.mxu0 %v2380
        %2502 = vmatprep.mubr.bf16.mxu0 %v2167
        %2503 = vmatmul.mubr.bf16.gmra.mxu0 %v2166
        %v2504 = vpop.f32.mrf.mxu0
        %v2505 = vadd.f32 %v2079, %v2504
        %v2506 = vpop.f32.mrf.mxu0
        %v2507 = vadd.f32 %v2081, %v2506
        %v2508 = vpop.f32.mrf.mxu0
        %v2509 = vadd.f32 %v2083, %v2508
        %v2510 = vpop.f32.mrf.mxu0
        %v2511 = vadd.f32 %v2085, %v2510
        %2512 = vmatprep.mubr.bf16.mxu0 %v2170
        %2513 = vmatmul.mubr.bf16.gmra.mxu0 %v2169
        %v2514 = vpop.f32.mrf.mxu0
        %v2515 = vadd.f32 %v2089, %v2514
        %v2516 = vpop.f32.mrf.mxu0
        %v2517 = vadd.f32 %v2091, %v2516
        %v2518 = vpop.f32.mrf.mxu0
        %v2519 = vadd.f32 %v2093, %v2518
        %v2520 = vpop.f32.mrf.mxu0
        %v2521 = vadd.f32 %v2095, %v2520
        %2522 = vdwg.mxu0
        %2523 = vmatprep.subr.bf16.mxu0 0
        %2524 = vmatpush1.bf16.msra.mxu0 0
        %2525 = vmatprep.subr.bf16.mxu0 0
        %2526 = vmatpush1.bf16.msra.mxu0 0
        %2527 = vmatprep.subr.bf16.mxu0 0
        %2528 = vmatpush1.bf16.msra.mxu0 0
        %2529 = vmatprep.subr.bf16.mxu0 0
        %2530 = vmatpush1.bf16.msra.mxu0 0
        %2531 = vmatprep.subr.bf16.mxu0 0
        %2532 = vmatpush1.bf16.msra.mxu0 0
        %2533 = vmatprep.subr.bf16.mxu0 0
        %2534 = vmatpush1.bf16.msra.mxu0 0
        %2535 = vmatprep.subr.bf16.mxu0 %v2408
        %2536 = vmatpush1.bf16.msra.mxu0 %v2407
        %2537 = vmatprep.subr.bf16.mxu0 %v2405
        %2538 = vmatpush1.bf16.msra.mxu0 %v2404
        %2539 = vmatprep.subr.bf16.mxu0 0
        %2540 = vmatpush2.bf16.msra.mxu0 0
        %2541 = vmatprep.subr.bf16.mxu0 0
        %2542 = vmatpush2.bf16.msra.mxu0 0
        %2543 = vmatprep.subr.bf16.mxu0 0
        %2544 = vmatpush2.bf16.msra.mxu0 0
        %2545 = vmatprep.subr.bf16.mxu0 0
        %2546 = vmatpush2.bf16.msra.mxu0 0
        %2547 = vmatprep.subr.bf16.mxu0 0
        %2548 = vmatpush2.bf16.msra.mxu0 0
        %2549 = vmatprep.subr.bf16.mxu0 0
        %2550 = vmatpush2.bf16.msra.mxu0 0
        %2551 = vmatprep.subr.bf16.mxu0 0
        %2552 = vmatpush2.bf16.msra.mxu0 0
        %2553 = vmatprep.subr.bf16.mxu0 0
        %2554 = vmatpush2.bf16.msra.mxu0 0
        %2555 = vmatprep.mubr.bf16.mxu0 0
        %2556 = vmatmul.mubr.bf16.gmra.mxu0 %v2465
        %v2557 = vpop.f32.mrf.mxu0
        %v2558 = vadd.f32 %v2505, %v2557
        %v2559 = vpop.f32.mrf.mxu0
        %v2560 = vadd.f32 %v2507, %v2559
        %v2561 = vpop.f32.mrf.mxu0
        %v2562 = vadd.f32 %v2509, %v2561
        %v2563 = vpop.f32.mrf.mxu0
        %v2564 = vadd.f32 %v2511, %v2563
        %2565 = vmatprep.mubr.bf16.mxu0 0
        %2566 = vmatmul.mubr.bf16.gmra.mxu0 %v2468
        %v2567 = vpop.f32.mrf.mxu0
        %v2568 = vadd.f32 %v2515, %v2567
        %v2569 = vpop.f32.mrf.mxu0
        %v2570 = vadd.f32 %v2517, %v2569
        %v2571 = vpop.f32.mrf.mxu0
        %v2572 = vadd.f32 %v2519, %v2571
        %v2573 = vpop.f32.mrf.mxu0
        %v2574 = vadd.f32 %v2521, %v2573
        %2575 = vdwg.mxu0
        %2576 = vmatprep.subr.bf16.mxu0 0
        %2577 = vmatpush1.bf16.msra.mxu0 %v2379
        %2578 = vmatprep.subr.bf16.mxu0 0
        %2579 = vmatpush1.bf16.msra.mxu0 %v2376
        %2580 = vmatprep.subr.bf16.mxu0 0
        %2581 = vmatpush1.bf16.msra.mxu0 %v2373
        %2582 = vmatprep.subr.bf16.mxu0 0
        %2583 = vmatpush1.bf16.msra.mxu0 %v2370
        %2584 = vmatprep.subr.bf16.mxu0 0
        %2585 = vmatpush1.bf16.msra.mxu0 %v2367
        %2586 = vmatprep.subr.bf16.mxu0 0
        %2587 = vmatpush1.bf16.msra.mxu0 %v2364
        %2588 = vmatprep.subr.bf16.mxu0 0
        %2589 = vmatpush1.bf16.msra.mxu0 %v2361
        %2590 = vmatprep.subr.bf16.mxu0 0
        %2591 = vmatpush1.bf16.msra.mxu0 %v2358
        %2592 = vmatprep.subr.bf16.mxu0 0
        %2593 = vmatpush2.bf16.msra.mxu0 %v2403
        %2594 = vmatprep.subr.bf16.mxu0 0
        %2595 = vmatpush2.bf16.msra.mxu0 %v2400
        %2596 = vmatprep.subr.bf16.mxu0 0
        %2597 = vmatpush2.bf16.msra.mxu0 %v2397
        %2598 = vmatprep.subr.bf16.mxu0 0
        %2599 = vmatpush2.bf16.msra.mxu0 %v2394
        %2600 = vmatprep.subr.bf16.mxu0 0
        %2601 = vmatpush2.bf16.msra.mxu0 %v2391
        %2602 = vmatprep.subr.bf16.mxu0 0
        %2603 = vmatpush2.bf16.msra.mxu0 %v2388
        %2604 = vmatprep.subr.bf16.mxu0 0
        %2605 = vmatpush2.bf16.msra.mxu0 %v2385
        %2606 = vmatprep.subr.bf16.mxu0 0
        %2607 = vmatpush2.bf16.msra.mxu0 %v2382
        %2608 = vmatprep.mubr.bf16.mxu0 %v2167
        %2609 = vmatmul.mubr.bf16.gmra.mxu0 %v2166
        %v2610 = vpop.f32.mrf.mxu0
        %v2611 = vadd.f32 %v2132, %v2610
        %v2612 = vpop.f32.mrf.mxu0
        %v2613 = vpop.f32.mrf.mxu0
        %v2614 = vadd.f32 %v2135, %v2613
        %v2615 = vpop.f32.mrf.mxu0
        %2616 = vmatprep.mubr.bf16.mxu0 %v2170
        %2617 = vmatmul.mubr.bf16.gmra.mxu0 %v2169
        %v2618 = vpop.f32.mrf.mxu0
        %v2619 = vadd.f32 %v2140, %v2618
        %v2620 = vpop.f32.mrf.mxu0
        %v2621 = vpop.f32.mrf.mxu0
        %v2622 = vadd.f32 %v2143, %v2621
        %v2623 = vpop.f32.mrf.mxu0
        %2624 = vdwg.mxu0
        %2625 = vmatprep.subr.bf16.mxu0 0
        %2626 = vmatpush1.bf16.msra.mxu0 0
        %2627 = vmatprep.subr.bf16.mxu0 0
        %2628 = vmatpush1.bf16.msra.mxu0 0
        %2629 = vmatprep.subr.bf16.mxu0 0
        %2630 = vmatpush1.bf16.msra.mxu0 0
        %2631 = vmatprep.subr.bf16.mxu0 0
        %2632 = vmatpush1.bf16.msra.mxu0 0
        %2633 = vmatprep.subr.bf16.mxu0 0
        %2634 = vmatpush1.bf16.msra.mxu0 0
        %2635 = vmatprep.subr.bf16.mxu0 0
        %2636 = vmatpush1.bf16.msra.mxu0 0
        %2637 = vmatprep.subr.bf16.mxu0 0
        %2638 = vmatpush1.bf16.msra.mxu0 %v2409
        %2639 = vmatprep.subr.bf16.mxu0 0
        %2640 = vmatpush1.bf16.msra.mxu0 %v2406
        %2641 = vmatprep.subr.bf16.mxu0 0
        %2642 = vmatpush2.bf16.msra.mxu0 0
        %2643 = vmatprep.subr.bf16.mxu0 0
        %2644 = vmatpush2.bf16.msra.mxu0 0
        %2645 = vmatprep.subr.bf16.mxu0 0
        %2646 = vmatpush2.bf16.msra.mxu0 0
        %2647 = vmatprep.subr.bf16.mxu0 0
        %2648 = vmatpush2.bf16.msra.mxu0 0
        %2649 = vmatprep.subr.bf16.mxu0 0
        %2650 = vmatpush2.bf16.msra.mxu0 0
        %2651 = vmatprep.subr.bf16.mxu0 0
        %2652 = vmatpush2.bf16.msra.mxu0 0
        %2653 = vmatprep.subr.bf16.mxu0 0
        %2654 = vmatpush2.bf16.msra.mxu0 0
        %2655 = vmatprep.subr.bf16.mxu0 0
        %2656 = vmatpush2.bf16.msra.mxu0 0
        %2657 = vmatprep.mubr.bf16.mxu0 0
        %2658 = vmatmul.mubr.bf16.gmra.mxu0 %v2465
        %v2659 = vpop.f32.mrf.mxu0
        %v2660 = vadd.f32 %v2611, %v2659
        %v2661 = vpop.f32.mrf.mxu0
        %v2662 = vpop.f32.mrf.mxu0
        %v2663 = vadd.f32 %v2614, %v2662
        %v2664 = vpop.f32.mrf.mxu0
        %2665 = vmatprep.mubr.bf16.mxu0 0
        %2666 = vmatmul.mubr.bf16.gmra.mxu0 %v2468
        %v2667 = vpop.f32.mrf.mxu0
        %v2668 = vadd.f32 %v2619, %v2667
        %v2669 = vpop.f32.mrf.mxu0
        %v2670 = vpop.f32.mrf.mxu0
        %v2671 = vadd.f32 %v2622, %v2670
        %v2672 = vpop.f32.mrf.mxu0
        %2673 = vdwg.mxu0
        %v2674 = vld [vmem:[%s6] sm:$0xff]
        %v2675 = vld [vmem:[%s6 + $0x8] sm:$0xff]
        %v2676 = vld [vmem:[%s6 + $0x10] sm:$0xff]
        %v2677 = vld [vmem:[%s6 + $0x18] sm:$0xff]
        %2679 = vset.pattern.permute.xlu0 0
        %2680 = vperm.xlu0 %2679, %v2674
        %v2681 = vpop.permute.xlu0 %2680
        %2684 = vset.pattern.permute.xlu0 0
        %2685 = vperm.xlu0 %2684, %v2675
        %v2686 = vpop.permute.xlu0 %2685
        %2689 = vset.pattern.permute.xlu0 0
        %2690 = vperm.xlu0 %2689, %v2676
        %v2691 = vpop.permute.xlu0 %2690
        %2694 = vset.pattern.permute.xlu0 0
        %2695 = vperm.xlu0 %2694, %v2677
        %v2696 = vpop.permute.xlu0 %2695
        %v2698 = vadd.f32 %v2558, %v2681
        %v2699 = vadd.f32 %v2560, %v2681
        %v2700 = vadd.f32 %v2660, %v2681
        %v2701 = vadd.f32 %v2562, %v2686
        %v2702 = vadd.f32 %v2564, %v2686
        %v2703 = vadd.f32 %v2663, %v2686
        %v2704 = vadd.f32 %v2568, %v2691
        %v2705 = vadd.f32 %v2570, %v2691
        %v2706 = vadd.f32 %v2668, %v2691
        %v2707 = vadd.f32 %v2572, %v2696
        %v2708 = vadd.f32 %v2574, %v2696
        %v2709 = vadd.f32 %v2671, %v2696
        %v2710 = vmax.f32 %v2698, 0.0
        %v2711 = vmax.f32 %v2699, 0.0
        %v2712 = vmax.f32 %v2700, 0.0
        %v2713 = vmax.f32 %v2701, 0.0
        %v2714 = vmax.f32 %v2702, 0.0
        %v2715 = vmax.f32 %v2703, 0.0
        %v2716 = vmax.f32 %v2704, 0.0
        %v2717 = vmax.f32 %v2705, 0.0
        %v2718 = vmax.f32 %v2706, 0.0
        %v2719 = vmax.f32 %v2707, 0.0
        %v2720 = vmax.f32 %v2708, 0.0
        %v2721 = vmax.f32 %v2709, 0.0
        %2722 = vst [vmem:[%s311] sm:$0xff] %v2710
        %2723 = vst [vmem:[%s311 + $0x8] sm:$0xff] %v2711
        %2724 = vst.msk [vmem:[%s311 + $0x10] sm:$0xff] %vm1153, %v2712
        %2725 = vst [vmem:[%s311 + $0x18] sm:$0xff] %v2713
        %2726 = vst [vmem:[%s311 + $0x20] sm:$0xff] %v2714
        %2727 = vst.msk [vmem:[%s311 + $0x28] sm:$0xff] %vm1153, %v2715
        %2728 = vst [vmem:[%s311 + $0x30] sm:$0xff] %v2716
        %2729 = vst [vmem:[%s311 + $0x38] sm:$0xff] %v2717
        %2730 = vst.msk [vmem:[%s311 + $0x40] sm:$0xff] %vm1153, %v2718
        %2731 = vst [vmem:[%s311 + $0x48] sm:$0xff] %v2719
        %2732 = vst [vmem:[%s311 + $0x50] sm:$0xff] %v2720
        %2733 = vst.msk [vmem:[%s311 + $0x58] sm:$0xff] %vm1153, %v2721
        %s2734 = sand.u32 %s185, 1
        %s2735 = scalar_lea.sflag [#allocation7], %s2734
        %s2736 = sand.u32 %s185, 1
        %s2737 = smul.addr %s2736, 96
        %s2738 = scalar_lea.vmem [#allocation10], %s2737
        // Predicated region
        $region57: #{tpu_custom_call.1} parent=47 // pred_check
          %p2739 = pneg %p195
        $region58: #{tpu_custom_call.1} parent=47 // pred_check_branch
          %2741 = sbr.rel (%p2739) target = $region60
        $region59: #{tpu_custom_call.1} parent=47 // pred_region
          %s2743 = ssub.s32 1536, 1536
          %2744 = vsyncadd %s2735, %s2743
          %s2745 = smul.addr %s25, 12
          %s2746 = smul.addr %s2745, 128
          %s2747 = scalar_lea.hbm %s7, %s2746
          %s2748 = sshll.u32 %s2738, 4
          %s2749 = int_to_ptr.vmem [resolvable:$true] %s2748
          %2754 = dma.vmem_to_hbm [thread:$0]  %s2749, 1536, %s2747, %s2735, 384, 384, 24
        $region60: #{tpu_custom_call.1} parent=47 // pred_fallthru
          _
      $region48: #{tpu_custom_call.1} parent=5 // pred_fallthru
        _
      %p2755 = scmp.le.s32.totalorder 2, %s20
      // Predicated region
      $region61: #{tpu_custom_call.1} parent=5 // pred_check
        %p2756 = pneg %p2755
      $region62: #{tpu_custom_call.1} parent=5 // pred_check_branch
        %2758 = sbr.rel (%p2756) target = $region64
      $region63: #{tpu_custom_call.1} parent=5 // pred_region
        %s2759 = ssub.s32 %s20, 2
        // Predicated region
        $region65: #{tpu_custom_call.1} parent=63 // pred_check
          %p2760 = pneg %p201
        $region66: #{tpu_custom_call.1} parent=63 // pred_check_branch
          %2762 = sbr.rel (%p2760) target = $region68
        $region67: #{tpu_custom_call.1} parent=63 // pred_region
          %s2763 = sand.u32 %s186, 1
          %s2764 = scalar_lea.sflag [#allocation7], %s2763
          %s2765 = sand.u32 %s186, 1
          %s2766 = smul.addr %s2765, 96
          %s2767 = scalar_lea.vmem [#allocation10], %s2766
          %2768 = dma.done %s2764, 1536
        $region68: #{tpu_custom_call.1} parent=63 // pred_fallthru
          _
      $region64: #{tpu_custom_call.1} parent=5 // pred_fallthru
        _
    $region6: #{tpu_custom_call.1} parent=1 // loop_footer
      %s24 = sadd.s32 1, %s20
    $region7: #{tpu_custom_call.1} parent=1 // loop_footer_branch
      %19 = sbr.rel target = $region3
    $region8: #{tpu_custom_call.1} parent=1 // loop_exit
      _
    %2769 = vsyncpa [#allocation6], 1
    %s2770 = scalar_lea.sflag [#allocation6], 1
    %2771 = vsyncpa %s2770, 1
    %2772 = vsyncpa [#allocation9], 1
    %2773 = vsyncpa [#allocation7], 1
    %s2774 = scalar_lea.sflag [#allocation7], 1
    %2775 = vsyncpa %s2774, 1

</llo_original>
